<compile_context>
chip_gen: v7x
topology: tpu7x:2x2x1
jax: 0.10.0
libtpu: 0.0.40
codegen_flags: <defaults>
</compile_context>

<pallas_src>
import functools

import jax
import jax.numpy as jnp
from jax.experimental import pallas as pl
from jax.experimental.pallas import tpu as pltpu

_H1, _H2, _H3 = 1024, 256, 64
_N_OUT = 2        # true output width of the final Linear(64, 2)
_OUT_PAD = 128    # lane-padded width used only for the final MXU matmul


def _round_up(x, m):
    return (x + m - 1) // m * m


def _mlp_kernel(x_ref,
                w1_ref, b1_ref,
                w2_ref, b2_ref,
                w3_ref, b3_ref,
                w4_ref, b4_ref,
                o_ref):
    """One [TB, in_len] batch tile through the whole projection MLP."""
    x = x_ref[...]

    # Linear(in_len, 1024) + ReLU        (BN1 folded into layer 2, Dropout = id)
    h = jnp.dot(x.astype(jnp.bfloat16), w1_ref[...],
                preferred_element_type=jnp.float32) + b1_ref[...]
    h = jnp.maximum(h, 0.0)

    # Linear(1024, 256) + ReLU  (weights carry BN1 fold; BN2 folded into layer 3)
    h = jnp.dot(h.astype(jnp.bfloat16), w2_ref[...],
                preferred_element_type=jnp.float32) + b2_ref[...]
    h = jnp.maximum(h, 0.0)

    # Linear(256, 64) + ReLU    (weights carry BN2 fold)
    h = jnp.dot(h.astype(jnp.bfloat16), w3_ref[...],
                preferred_element_type=jnp.float32) + b3_ref[...]
    h = jnp.maximum(h, 0.0)

    # Linear(64, 2): matmul against the 128-lane-padded weights (MXU-friendly),
    # but store only the 2 real output columns (narrow masked vst, no padded
    # f32 HBM writeback).
    out = jnp.dot(h.astype(jnp.bfloat16), w4_ref[...],
                  preferred_element_type=jnp.float32) + b4_ref[...]
    o_ref[...] = out[:, :_N_OUT].astype(o_ref.dtype)


def _choose_tb(batch, block_batch=1024):
    """Pick the batch tile.

    Goals from the perf review: >=2 grid steps whenever the batch allows
    (v7x megacore + DMA/compute overlap), tiles that are multiples of 8
    sublanes (snapped to 256 when that costs <~6% padding, MXU-friendly on
    v5e/v6e/v7x), bounded batch-padding waste, and large (up to 1024-row)
    tiles for big batches to amortize per-grid-step overhead on v6e.
    """
    cap = max(256, (min(block_batch, 2048) // 256) * 256)
    if batch <= 128:
        return _round_up(batch, 8)                       # tiny batch: one tile

    best_tb, best_cost = None, None
    max_steps = max(2, -(-batch // 256))                 # ceil(batch/256)
    for n_steps in range(2, max_steps + 1):
        tb = _round_up(-(-batch // n_steps), 8)          # smallest covering tile
        tb256 = _round_up(tb, 256)
        if tb256 <= cap and (tb256 * n_steps - batch) <= 0.06 * batch:
            tb = tb256                                   # cheap 256-alignment
        if tb > cap:
            continue
        padded = _round_up(batch, tb)
        # pad waste vs per-step overhead trade-off
        cost = (padded - batch) / batch + 0.01 * (padded // tb)
        if best_cost is None or cost < best_cost:
            best_tb, best_cost = tb, cost
    if best_tb is None:                                  # cannot split: one tile
        return min(_round_up(batch, 8), cap)
    return best_tb


def _vmem_limit_bytes(in_len, tb):
    # bf16 weights + f32 biases; default pipelining double-buffers every input.
    w_bytes = 2 * 2 * (in_len * _H1 + _H1 * _H2 + _H2 * _H3 + _H3 * _OUT_PAD)
    b_bytes = 2 * 4 * (_H1 + _H2 + _H3 + _OUT_PAD)
    io_bytes = 2 * 4 * tb * (in_len + _N_OUT)            # double-buffered x/out tiles
    act_f32 = 4 * tb * (_H1 + _H2 + _H3 + _OUT_PAD)      # f32 intermediates
    act_bf16 = 2 * tb * (in_len + _H1 + _H2 + _H3)       # bf16 copies fed to the MXU
    need = w_bytes + b_bytes + io_bytes + act_f32 + act_bf16
    return int(min(max(need + need // 2 + (4 << 20), 16 << 20), 48 << 20))


def projection11_forward(x, kernel_params, *, block_batch=1024):
    """x: [batch, in_len] f32 (or bf16) -> [batch, 2] f32 (eval-mode forward)."""
    batch, in_len = x.shape
    (w1, b1, w2, b2, w3, b3, w4, b4) = kernel_params

    tb = _choose_tb(batch, block_batch)
    padded = _round_up(batch, tb)
    if padded != batch:
        x = jnp.pad(x, ((0, padded - batch), (0, 0)))
    grid = (padded // tb,)

    def const(shape):
        # Weights/biases: same block every grid step -> stay resident in VMEM.
        return pl.BlockSpec(shape, lambda i: (0, 0))

    in_specs = [
        pl.BlockSpec((tb, in_len), lambda i: (i, 0)),     # x tile
        const((in_len, _H1)), const((1, _H1)),
        const((_H1, _H2)), const((1, _H2)),
        const((_H2, _H3)), const((1, _H3)),
        const((_H3, _OUT_PAD)), const((1, _OUT_PAD)),
    ]
    # Narrow (tb, 2) output block: legal since 2 == full array last dim.
    out_specs = pl.BlockSpec((tb, _N_OUT), lambda i: (i, 0))

    flops = 2 * padded * (in_len * _H1 + _H1 * _H2 + _H2 * _H3 + _H3 * _OUT_PAD)
    bytes_accessed = (
        x.dtype.itemsize * padded * in_len                                 # x
        + 2 * (in_len * _H1 + _H1 * _H2 + _H2 * _H3 + _H3 * _OUT_PAD)      # bf16 weights
        + 4 * (_H1 + _H2 + _H3 + _OUT_PAD)                                 # biases
        + 4 * padded * _N_OUT                                              # out
    )

    out = pl.pallas_call(
        _mlp_kernel,
        out_shape=jax.ShapeDtypeStruct((padded, _N_OUT), jnp.float32),
        grid=grid,
        in_specs=in_specs,
        out_specs=out_specs,
        compiler_params=pltpu.CompilerParams(
            dimension_semantics=("parallel",),
            vmem_limit_bytes=_vmem_limit_bytes(in_len, tb),
        ),
        cost_estimate=pl.CostEstimate(
            flops=flops, transcendentals=0, bytes_accessed=bytes_accessed),
    )(x, w1, b1, w2, b2, w3, b3, w4, b4)

    if padded != batch:
        out = out[:batch]
    # outputs.view(-1, outputs.size(-1)) is a no-op reshape for 2-D input.
    return out.reshape(-1, _N_OUT)


# ----------------------------------------------------------------------------
# Parameter construction / preparation
# ----------------------------------------------------------------------------

def make_params(key, in_len):
    """Module-equivalent f32 params (shapes match the PyTorch module).

    BatchNorm running stats / affine params are random (non-identity) so the
    eval-mode BN fold is actually exercised by the self-test.
    """
    ks = jax.random.split(key, 16)

    def linear(kw, kb, fan_in, fan_out):
        bound = 1.0 / jnp.sqrt(fan_in)  # torch.nn.Linear default bound
        w = jax.random.uniform(kw, (fan_in, fan_out), jnp.float32, -bound, bound)
        b = jax.random.uniform(kb, (1, fan_out), jnp.float32, -bound, bound)
        return w, b

    w1, b1 = linear(ks[0], ks[1], in_len, _H1)
    w2, b2 = linear(ks[2], ks[3], _H1, _H2)
    w3, b3 = linear(ks[4], ks[5], _H2, _H3)
    w4, b4 = linear(ks[6], ks[7], _H3, 2)

    eps = 1e-5

    def bn_fold(kg, kb, km, kv, n):
        gamma = jax.random.uniform(kg, (1, n), jnp.float32, 0.5, 1.5)
        beta = 0.1 * jax.random.normal(kb, (1, n), jnp.float32)
        running_mean = 0.1 * jax.random.normal(km, (1, n), jnp.float32)
        running_var = jax.random.uniform(kv, (1, n), jnp.float32, 0.5, 1.5)
        scale = gamma / jnp.sqrt(running_var + eps)
        shift = beta - running_mean * scale
        return scale, shift

    s1, t1 = bn_fold(ks[8], ks[9], ks[10], ks[11], _H1)
    s2, t2 = bn_fold(ks[12], ks[13], ks[14], ks[15], _H2)
    return (w1, b1, s1, t1, w2, b2, s2, t2, w3, b3, w4, b4)


def prepare_kernel_params(params):
    """Fold eval-mode BN into the next linear, cast weights to bf16, pad layer 4."""
    (w1, b1, s1, t1, w2, b2, s2, t2, w3, b3, w4, b4) = params

    # relu(x@w1+b1)*s1 + t1 then @w2 + b2  ==  relu(x@w1+b1) @ (s1^T*w2) + (t1@w2 + b2)
    w2f = w2 * s1.reshape(-1, 1)
    b2f = b2 + t1 @ w2
    w3f = w3 * s2.reshape(-1, 1)
    b3f = b3 + t2 @ w3

    # Lane-padded final layer weights for the MXU (store path stays 2-wide).
    w4p = jnp.zeros((_H3, _OUT_PAD), jnp.float32).at[:, :_N_OUT].set(w4)
    b4p = jnp.zeros((1, _OUT_PAD), jnp.float32).at[:, :_N_OUT].set(b4)

    bf16 = lambda w: w.astype(jnp.bfloat16)
    return (bf16(w1), b1, bf16(w2f), b2f, bf16(w3f), b3f, bf16(w4p), b4p)


# ----------------------------------------------------------------------------
# References
# ----------------------------------------------------------------------------

def reference_forward_f32(x, params):
    """Exact eval-mode module math in f32 (BN as scale/shift, Dropout = id)."""
    (w1, b1, s1, t1, w2, b2, s2, t2, w3, b3, w4, b4) = params
    h = jnp.maximum(x @ w1 + b1, 0.0) * s1 + t1
    h = jnp.maximum(h @ w2 + b2, 0.0) * s2 + t2
    h = jnp.maximum(h @ w3 + b3, 0.0)
    return (h @ w4 + b4).reshape(-1, 2)


def reference_forward_kernelmath(x, kernel_params):
    """Same math as the kernel (bf16 weights/activations, f32 accumulation)."""
    (w1, b1, w2, b2, w3, b3, w4, b4) = kernel_params
    dot = functools.partial(jnp.dot, preferred_element_type=jnp.float32)
    h = jnp.maximum(dot(x.astype(jnp.bfloat16), w1) + b1, 0.0)
    h = jnp.maximum(dot(h.astype(jnp.bfloat16), w2) + b2, 0.0)
    h = jnp.maximum(dot(h.astype(jnp.bfloat16), w3) + b3, 0.0)
    out = dot(h.astype(jnp.bfloat16), w4) + b4
    return out[:, :_N_OUT].reshape(-1, _N_OUT)


if __name__ == "__main__":
    batch, in_len = 8, 64   # hla_pep_inputs: [batch, output_len_of_pretrained*2]
    key = jax.random.PRNGKey(0)
    kx, kp = jax.random.split(key)

    x = jax.random.normal(kx, (batch, in_len), jnp.float32)
    params = make_params(kp, in_len)
    kparams = prepare_kernel_params(params)

    out = projection11_forward(x, kparams)
    out = jax.block_until_ready(out)
    assert out.shape == (batch, 2), out.shape

    # Check against a JAX reference doing the same bf16-weight / f32-acc math.
    ref_bf16 = reference_forward_kernelmath(x, kparams)
    assert jnp.allclose(out, ref_bf16, atol=2e-3, rtol=2e-3), "mismatch vs bf16 reference"

    # Sanity check against the full-f32 module math with non-identity BN stats
    # (tolerance covers the bf16 weight/activation quantization).
    ref_f32 = reference_forward_f32(x, params)
    assert jnp.allclose(out, ref_f32, atol=5e-2, rtol=5e-2), "mismatch vs f32 reference"

    print("KERNEL_OK")
</pallas_src>

<mosaic_0001>
module attributes {stable_mosaic.version = 11 : i64} {
  func.func @_mlp_kernel(%arg0: i32, %arg1: memref<8x64xf32, #tpu.memory_space<vmem>>, %arg2: memref<64x1024xbf16, #tpu.memory_space<vmem>>, %arg3: memref<1x1024xf32, #tpu.memory_space<vmem>>, %arg4: memref<1024x256xbf16, #tpu.memory_space<vmem>>, %arg5: memref<1x256xf32, #tpu.memory_space<vmem>>, %arg6: memref<256x64xbf16, #tpu.memory_space<vmem>>, %arg7: memref<1x64xf32, #tpu.memory_space<vmem>>, %arg8: memref<64x128xbf16, #tpu.memory_space<vmem>>, %arg9: memref<1x128xf32, #tpu.memory_space<vmem>>, %arg10: memref<8x2xf32, #tpu.memory_space<vmem>>) attributes {dimension_semantics = [#tpu.dimension_semantics<parallel>], iteration_bounds = array<i64: 1>, scalar_prefetch = 0 : i64, scratch_operands = 0 : i64, tpu.core_type = #tpu.core_type<tc>, window_params = [{transform_indices = @transform_0, window_bounds = array<i64: 8, 64>}, {pipeline_mode = #tpu.pipeline_mode<synchronous>, transform_indices = @transform_1, window_bounds = array<i64: 64, 1024>}, {pipeline_mode = #tpu.pipeline_mode<synchronous>, transform_indices = @transform_2, window_bounds = array<i64: 1, 1024>}, {pipeline_mode = #tpu.pipeline_mode<synchronous>, transform_indices = @transform_3, window_bounds = array<i64: 1024, 256>}, {pipeline_mode = #tpu.pipeline_mode<synchronous>, transform_indices = @transform_4, window_bounds = array<i64: 1, 256>}, {pipeline_mode = #tpu.pipeline_mode<synchronous>, transform_indices = @transform_5, window_bounds = array<i64: 256, 64>}, {pipeline_mode = #tpu.pipeline_mode<synchronous>, transform_indices = @transform_6, window_bounds = array<i64: 1, 64>}, {pipeline_mode = #tpu.pipeline_mode<synchronous>, transform_indices = @transform_7, window_bounds = array<i64: 64, 128>}, {pipeline_mode = #tpu.pipeline_mode<synchronous>, transform_indices = @transform_8, window_bounds = array<i64: 1, 128>}, {transform_indices = @transform_9, window_bounds = array<i64: 8, 2>}]} {
    %c0 = arith.constant 0 : index
    %c0_0 = arith.constant 0 : index
    %0 = vector.load %arg1[%c0, %c0_0] : memref<8x64xf32, #tpu.memory_space<vmem>>, vector<8x64xf32>
    %1 = arith.truncf %0 : vector<8x64xf32> to vector<8x64xbf16>
    %c0_1 = arith.constant 0 : index
    %c0_2 = arith.constant 0 : index
    %2 = vector.load %arg2[%c0_1, %c0_2] : memref<64x1024xbf16, #tpu.memory_space<vmem>>, vector<64x1024xbf16>
    %cst = arith.constant dense<0.000000e+00> : vector<8x1024xf32>
    %3 = tpu.matmul %1, %2, %cst {dimension_numbers = #tpu.dot_dimension_numbers<[1], [0], [0], [1], [0, 0, 1, 1], [], []>} : vector<8x64xbf16>, vector<64x1024xbf16>, vector<8x1024xf32> -> vector<8x1024xf32>
    %c0_3 = arith.constant 0 : index
    %c0_4 = arith.constant 0 : index
    %4 = vector.load %arg3[%c0_3, %c0_4] : memref<1x1024xf32, #tpu.memory_space<vmem>>, vector<1x1024xf32>
    %5 = vector.broadcast %4 : vector<1x1024xf32> to vector<8x1024xf32>
    %6 = arith.addf %3, %5 : vector<8x1024xf32>
    %cst_5 = arith.constant 0.000000e+00 : f32
    %7 = vector.broadcast %cst_5 : f32 to vector<8x1024xf32>
    %8 = arith.maximumf %6, %7 : vector<8x1024xf32>
    %9 = arith.truncf %8 : vector<8x1024xf32> to vector<8x1024xbf16>
    %c0_6 = arith.constant 0 : index
    %c0_7 = arith.constant 0 : index
    %10 = vector.load %arg4[%c0_6, %c0_7] : memref<1024x256xbf16, #tpu.memory_space<vmem>>, vector<1024x256xbf16>
    %cst_8 = arith.constant dense<0.000000e+00> : vector<8x256xf32>
    %11 = tpu.matmul %9, %10, %cst_8 {dimension_numbers = #tpu.dot_dimension_numbers<[1], [0], [0], [1], [0, 0, 1, 1], [], []>} : vector<8x1024xbf16>, vector<1024x256xbf16>, vector<8x256xf32> -> vector<8x256xf32>
    %c0_9 = arith.constant 0 : index
    %c0_10 = arith.constant 0 : index
    %12 = vector.load %arg5[%c0_9, %c0_10] : memref<1x256xf32, #tpu.memory_space<vmem>>, vector<1x256xf32>
    %13 = vector.broadcast %12 : vector<1x256xf32> to vector<8x256xf32>
    %14 = arith.addf %11, %13 : vector<8x256xf32>
    %cst_11 = arith.constant 0.000000e+00 : f32
    %15 = vector.broadcast %cst_11 : f32 to vector<8x256xf32>
    %16 = arith.maximumf %14, %15 : vector<8x256xf32>
    %17 = arith.truncf %16 : vector<8x256xf32> to vector<8x256xbf16>
    %c0_12 = arith.constant 0 : index
    %c0_13 = arith.constant 0 : index
    %18 = vector.load %arg6[%c0_12, %c0_13] : memref<256x64xbf16, #tpu.memory_space<vmem>>, vector<256x64xbf16>
    %cst_14 = arith.constant dense<0.000000e+00> : vector<8x64xf32>
    %19 = tpu.matmul %17, %18, %cst_14 {dimension_numbers = #tpu.dot_dimension_numbers<[1], [0], [0], [1], [0, 0, 1, 1], [], []>} : vector<8x256xbf16>, vector<256x64xbf16>, vector<8x64xf32> -> vector<8x64xf32>
    %c0_15 = arith.constant 0 : index
    %c0_16 = arith.constant 0 : index
    %20 = vector.load %arg7[%c0_15, %c0_16] : memref<1x64xf32, #tpu.memory_space<vmem>>, vector<1x64xf32>
    %21 = vector.broadcast %20 : vector<1x64xf32> to vector<8x64xf32>
    %22 = arith.addf %19, %21 : vector<8x64xf32>
    %cst_17 = arith.constant 0.000000e+00 : f32
    %23 = vector.broadcast %cst_17 : f32 to vector<8x64xf32>
    %24 = arith.maximumf %22, %23 : vector<8x64xf32>
    %25 = arith.truncf %24 : vector<8x64xf32> to vector<8x64xbf16>
    %c0_18 = arith.constant 0 : index
    %c0_19 = arith.constant 0 : index
    %26 = vector.load %arg8[%c0_18, %c0_19] : memref<64x128xbf16, #tpu.memory_space<vmem>>, vector<64x128xbf16>
    %cst_20 = arith.constant dense<0.000000e+00> : vector<8x128xf32>
    %27 = tpu.matmul %25, %26, %cst_20 {dimension_numbers = #tpu.dot_dimension_numbers<[1], [0], [0], [1], [0, 0, 1, 1], [], []>} : vector<8x64xbf16>, vector<64x128xbf16>, vector<8x128xf32> -> vector<8x128xf32>
    %c0_21 = arith.constant 0 : index
    %c0_22 = arith.constant 0 : index
    %28 = vector.load %arg9[%c0_21, %c0_22] : memref<1x128xf32, #tpu.memory_space<vmem>>, vector<1x128xf32>
    %29 = vector.broadcast %28 : vector<1x128xf32> to vector<8x128xf32>
    %30 = arith.addf %27, %29 : vector<8x128xf32>
    %31 = vector.extract_strided_slice %30 {offsets = [0, 0], sizes = [8, 2], strides = [1, 1]} : vector<8x128xf32> to vector<8x2xf32>
    %c0_23 = arith.constant 0 : index
    %c0_24 = arith.constant 0 : index
    %32 = vector.load %arg10[%c0_23, %c0_24] : memref<8x2xf32, #tpu.memory_space<vmem>>, vector<8x2xf32>
    tpu.vector_store %arg10[%c0_23, %c0_24], %31 {strides = array<i32>} : memref<8x2xf32, #tpu.memory_space<vmem>>, vector<8x2xf32>,
    return
  }
  func.func @transform_0(%arg0: i32) -> (i32, i32) {
    %c0_i32 = arith.constant 0 : i32
    %c0_i32_0 = arith.constant 0 : i32
    return %arg0, %c0_i32 : i32, i32
  }
  func.func @transform_1(%arg0: i32) -> (i32, i32) {
    %c0_i32 = arith.constant 0 : i32
    %c0_i32_0 = arith.constant 0 : i32
    %c0_i32_1 = arith.constant 0 : i32
    return %c0_i32, %c0_i32_0 : i32, i32
  }
  func.func @transform_2(%arg0: i32) -> (i32, i32) {
    %c0_i32 = arith.constant 0 : i32
    %c0_i32_0 = arith.constant 0 : i32
    %c0_i32_1 = arith.constant 0 : i32
    return %c0_i32, %c0_i32_0 : i32, i32
  }
  func.func @transform_3(%arg0: i32) -> (i32, i32) {
    %c0_i32 = arith.constant 0 : i32
    %c0_i32_0 = arith.constant 0 : i32
    %c0_i32_1 = arith.constant 0 : i32
    return %c0_i32, %c0_i32_0 : i32, i32
  }
  func.func @transform_4(%arg0: i32) -> (i32, i32) {
    %c0_i32 = arith.constant 0 : i32
    %c0_i32_0 = arith.constant 0 : i32
    %c0_i32_1 = arith.constant 0 : i32
    return %c0_i32, %c0_i32_0 : i32, i32
  }
  func.func @transform_5(%arg0: i32) -> (i32, i32) {
    %c0_i32 = arith.constant 0 : i32
    %c0_i32_0 = arith.constant 0 : i32
    %c0_i32_1 = arith.constant 0 : i32
    return %c0_i32, %c0_i32_0 : i32, i32
  }
  func.func @transform_6(%arg0: i32) -> (i32, i32) {
    %c0_i32 = arith.constant 0 : i32
    %c0_i32_0 = arith.constant 0 : i32
    %c0_i32_1 = arith.constant 0 : i32
    return %c0_i32, %c0_i32_0 : i32, i32
  }
  func.func @transform_7(%arg0: i32) -> (i32, i32) {
    %c0_i32 = arith.constant 0 : i32
    %c0_i32_0 = arith.constant 0 : i32
    %c0_i32_1 = arith.constant 0 : i32
    return %c0_i32, %c0_i32_0 : i32, i32
  }
  func.func @transform_8(%arg0: i32) -> (i32, i32) {
    %c0_i32 = arith.constant 0 : i32
    %c0_i32_0 = arith.constant 0 : i32
    %c0_i32_1 = arith.constant 0 : i32
    return %c0_i32, %c0_i32_0 : i32, i32
  }
  func.func @transform_9(%arg0: i32) -> (i32, i32) {
    %c0_i32 = arith.constant 0 : i32
    %c0_i32_0 = arith.constant 0 : i32
    return %arg0, %c0_i32 : i32, i32
  }
}

</mosaic_0001>

<llo_original>
// kernel: tpu_custom_call.1
$region0: #{tpu_custom_call.1}
  #allocation0 [shape = 'u32[]', space=smem, size = 0x4, offset = 0x4, fixed_abs, tag = 'smem constant byte address 0x4 - core index']
  #allocation1 [shape = 'u32[144,128]{1,0:T(1,128)}', space=vmem, size = 0x12000, scoped, tag = 'internal scratch']
  %s0 = inlined_call_operand.vmem [shape: f32[8,64], index: 0, kind: input, shape index: {}]
  %s1 = inlined_call_operand.hbm [shape: bf16[64,1024], index: 1, kind: input, shape index: {}]
  %s2 = inlined_call_operand.vmem [shape: f32[1,1024], index: 2, kind: input, shape index: {}]
  %s3 = inlined_call_operand.hbm [shape: bf16[1024,256], index: 3, kind: input, shape index: {}]
  %s4 = inlined_call_operand.vmem [shape: f32[1,256], index: 4, kind: input, shape index: {}]
  %s5 = inlined_call_operand.vmem [shape: bf16[256,64], index: 5, kind: input, shape index: {}]
  %s6 = inlined_call_operand.vmem [shape: f32[1,64], index: 6, kind: input, shape index: {}]
  %s7 = inlined_call_operand.vmem [shape: bf16[64,128], index: 7, kind: input, shape index: {}]
  %s8 = inlined_call_operand.vmem [shape: f32[1,128], index: 8, kind: input, shape index: {}]
  %s9 = inlined_call_operand.vmem [shape: f32[8,2], index: 9, kind: output, shape index: {}]
  %s10 = sld [smem:[#allocation0]]
  $region54: #{tpu_custom_call.1} parent=0
    _
  %s12 = ssub.s32 1, %s10
  %s13 = scalar_select 0, %s12, %s10
  $region1: #{tpu_custom_call.1} parent=0
    #allocation2 [shape = 'u8[131072]{0}', space=vmem, size = 0x20000, scoped, tag = 'input window, operand 1, single buffered']
    #allocation3 [shape = 's32[1]{0}', space=sflag, size = 0x4, scoped, tag = 'scoped memory for tpu_custom_call.1']
    #allocation4 [shape = 'u8[524288]{0}', space=vmem, size = 0x80000, scoped, tag = 'input window, operand 3, single buffered']
    #allocation5 [shape = 's32[1]{0}', space=sflag, size = 0x4, scoped, tag = 'scoped memory for tpu_custom_call.1']
    %14 = vsyncpa [#allocation3], 0
    %15 = vsyncpa [#allocation5], 0
    // Predicated region
    $region2: #{tpu_custom_call.1} parent=1 // pred_check
      _
    $region3: #{tpu_custom_call.1} parent=1 // pred_check_branch
      %17 = sbr.rel (0) target = $region5
    $region4: #{tpu_custom_call.1} parent=1 // pred_region
      _
    $region5: #{tpu_custom_call.1} parent=1 // pred_fallthru
      _
    // Predicated region
    $region6: #{tpu_custom_call.1} parent=1 // pred_check
      _
    $region7: #{tpu_custom_call.1} parent=1 // pred_check_branch
      %19 = sbr.rel (0) target = $region9
    $region8: #{tpu_custom_call.1} parent=1 // pred_region
      %s21 = ssub.s32 4096, 4096
      %22 = vsyncadd [#allocation3], %s21
      %s23 = sshll.u32 [#allocation2], 4
      %s24 = int_to_ptr.vmem [resolvable:$true] %s23
      %29 = dma.hbm_to_vmem [thread:$0]  %s1, 4096, %s24, [#allocation3], 512, 512, 32
    $region9: #{tpu_custom_call.1} parent=1 // pred_fallthru
      _
    // Predicated region
    $region10: #{tpu_custom_call.1} parent=1 // pred_check
      _
    $region11: #{tpu_custom_call.1} parent=1 // pred_check_branch
      %31 = sbr.rel (0) target = $region13
    $region12: #{tpu_custom_call.1} parent=1 // pred_region
      _
    $region13: #{tpu_custom_call.1} parent=1 // pred_fallthru
      _
    // Predicated region
    $region14: #{tpu_custom_call.1} parent=1 // pred_check
      _
    $region15: #{tpu_custom_call.1} parent=1 // pred_check_branch
      %33 = sbr.rel (0) target = $region17
    $region16: #{tpu_custom_call.1} parent=1 // pred_region
      %s35 = ssub.s32 16384, 16384
      %36 = vsyncadd [#allocation5], %s35
      %s37 = sshll.u32 [#allocation4], 4
      %s38 = int_to_ptr.vmem [resolvable:$true] %s37
      %43 = dma.hbm_to_vmem [thread:$0]  %s3, 16384, %s38, [#allocation5], 128, 128, 8
    $region17: #{tpu_custom_call.1} parent=1 // pred_fallthru
      _
    // Predicated region
    $region18: #{tpu_custom_call.1} parent=1 // pred_check
      _
    $region19: #{tpu_custom_call.1} parent=1 // pred_check_branch
      %45 = sbr.rel (0) target = $region21
    $region20: #{tpu_custom_call.1} parent=1 // pred_region
      _
    $region21: #{tpu_custom_call.1} parent=1 // pred_fallthru
      _
    // Predicated region
    $region22: #{tpu_custom_call.1} parent=1 // pred_check
      _
    $region23: #{tpu_custom_call.1} parent=1 // pred_check_branch
      %47 = sbr.rel (0) target = $region25
    $region24: #{tpu_custom_call.1} parent=1 // pred_region
      _
    $region25: #{tpu_custom_call.1} parent=1 // pred_fallthru
      _
    // Predicated region
    $region26: #{tpu_custom_call.1} parent=1 // pred_check
      _
    $region27: #{tpu_custom_call.1} parent=1 // pred_check_branch
      %49 = sbr.rel (0) target = $region29
    $region28: #{tpu_custom_call.1} parent=1 // pred_region
      _
    $region29: #{tpu_custom_call.1} parent=1 // pred_fallthru
      _
    // Predicated region
    $region30: #{tpu_custom_call.1} parent=1 // pred_check
      _
    $region31: #{tpu_custom_call.1} parent=1 // pred_check_branch
      %51 = sbr.rel (0) target = $region33
    $region32: #{tpu_custom_call.1} parent=1 // pred_region
      _
    $region33: #{tpu_custom_call.1} parent=1 // pred_fallthru
      _
    // Predicated region
    $region34: #{tpu_custom_call.1} parent=1 // pred_check
      _
    $region35: #{tpu_custom_call.1} parent=1 // pred_check_branch
      %53 = sbr.rel (0) target = $region37
    $region36: #{tpu_custom_call.1} parent=1 // pred_region
      _
    $region37: #{tpu_custom_call.1} parent=1 // pred_fallthru
      _
    // Predicated region
    $region38: #{tpu_custom_call.1} parent=1 // pred_check
      _
    $region39: #{tpu_custom_call.1} parent=1 // pred_check_branch
      %55 = sbr.rel (0) target = $region41
    $region40: #{tpu_custom_call.1} parent=1 // pred_region
      %56 = dma.done [#allocation3], 4096
    $region41: #{tpu_custom_call.1} parent=1 // pred_fallthru
      _
    // Predicated region
    $region42: #{tpu_custom_call.1} parent=1 // pred_check
      _
    $region43: #{tpu_custom_call.1} parent=1 // pred_check_branch
      %58 = sbr.rel (0) target = $region45
    $region44: #{tpu_custom_call.1} parent=1 // pred_region
      %59 = dma.done [#allocation5], 16384
    $region45: #{tpu_custom_call.1} parent=1 // pred_fallthru
      _
    %v61 = vld [vmem:[%s0] sm:$0xff]
    %v62 = vpack.c.bf16 %v61, %v61
    %v63 = vld [vmem:[#allocation2] sm:$0xff]
    %v64 = vld [vmem:[#allocation2 + $0x8] sm:$0xff]
    %v65 = vld [vmem:[#allocation2 + $0x10] sm:$0xff]
    %v66 = vld [vmem:[#allocation2 + $0x18] sm:$0xff]
    %v67 = vld [vmem:[#allocation2 + $0x20] sm:$0xff]
    %v68 = vld [vmem:[#allocation2 + $0x28] sm:$0xff]
    %v69 = vld [vmem:[#allocation2 + $0x30] sm:$0xff]
    %v70 = vld [vmem:[#allocation2 + $0x38] sm:$0xff]
    %v71 = vld [vmem:[#allocation2 + $0x40] sm:$0xff]
    %v72 = vld [vmem:[#allocation2 + $0x48] sm:$0xff]
    %v73 = vld [vmem:[#allocation2 + $0x50] sm:$0xff]
    %v74 = vld [vmem:[#allocation2 + $0x58] sm:$0xff]
    %v75 = vld [vmem:[#allocation2 + $0x60] sm:$0xff]
    %v76 = vld [vmem:[#allocation2 + $0x68] sm:$0xff]
    %v77 = vld [vmem:[#allocation2 + $0x70] sm:$0xff]
    %v78 = vld [vmem:[#allocation2 + $0x78] sm:$0xff]
    %v79 = vld [vmem:[#allocation2 + $0x80] sm:$0xff]
    %v80 = vld [vmem:[#allocation2 + $0x88] sm:$0xff]
    %v81 = vld [vmem:[#allocation2 + $0x90] sm:$0xff]
    %v82 = vld [vmem:[#allocation2 + $0x98] sm:$0xff]
    %v83 = vld [vmem:[#allocation2 + $0xa0] sm:$0xff]
    %v84 = vld [vmem:[#allocation2 + $0xa8] sm:$0xff]
    %v85 = vld [vmem:[#allocation2 + $0xb0] sm:$0xff]
    %v86 = vld [vmem:[#allocation2 + $0xb8] sm:$0xff]
    %v87 = vld [vmem:[#allocation2 + $0xc0] sm:$0xff]
    %v88 = vld [vmem:[#allocation2 + $0xc8] sm:$0xff]
    %v89 = vld [vmem:[#allocation2 + $0xd0] sm:$0xff]
    %v90 = vld [vmem:[#allocation2 + $0xd8] sm:$0xff]
    %v91 = vld [vmem:[#allocation2 + $0xe0] sm:$0xff]
    %v92 = vld [vmem:[#allocation2 + $0xe8] sm:$0xff]
    %v93 = vld [vmem:[#allocation2 + $0xf0] sm:$0xff]
    %v94 = vld [vmem:[#allocation2 + $0xf8] sm:$0xff]
    %v95 = vld [vmem:[%s2] sm:$0xff]
    %v97 = vlaneseq
    %v98 = vshrl.u32 %v97, 7
    %v99 = vsub.s32 0, %v98
    %v100 = vrot.slane %v95, %v99
    %v101 = vlaneseq
    %v102 = vshrl.u32 %v101, 7
    %v103 = vsub.s32 1, %v102
    %v104 = vrot.slane %v95, %v103
    %v105 = vlaneseq
    %v106 = vshrl.u32 %v105, 7
    %v107 = vsub.s32 2, %v106
    %v108 = vrot.slane %v95, %v107
    %v109 = vlaneseq
    %v110 = vshrl.u32 %v109, 7
    %v111 = vsub.s32 3, %v110
    %v112 = vrot.slane %v95, %v111
    %v113 = vlaneseq
    %v114 = vshrl.u32 %v113, 7
    %v115 = vsub.s32 4, %v114
    %v116 = vrot.slane %v95, %v115
    %v117 = vlaneseq
    %v118 = vshrl.u32 %v117, 7
    %v119 = vsub.s32 5, %v118
    %v120 = vrot.slane %v95, %v119
    %v121 = vlaneseq
    %v122 = vshrl.u32 %v121, 7
    %v123 = vsub.s32 6, %v122
    %v124 = vrot.slane %v95, %v123
    %v125 = vlaneseq
    %v126 = vshrl.u32 %v125, 7
    %v127 = vsub.s32 7, %v126
    %v128 = vrot.slane %v95, %v127
    %v169 = vunpack.c.l.b16 %v63
    %v170 = vunpack.c.h.b16 %v63
    %v171 = vunpack.c.l.b16 %v64
    %v172 = vunpack.c.h.b16 %v64
    %v173 = vunpack.c.l.b16 %v65
    %v174 = vunpack.c.h.b16 %v65
    %v175 = vunpack.c.l.b16 %v66
    %v176 = vunpack.c.h.b16 %v66
    %v177 = vunpack.c.l.b16 %v67
    %v178 = vunpack.c.h.b16 %v67
    %v179 = vunpack.c.l.b16 %v68
    %v180 = vunpack.c.h.b16 %v68
    %v181 = vunpack.c.l.b16 %v69
    %v182 = vunpack.c.h.b16 %v69
    %v183 = vunpack.c.l.b16 %v70
    %v184 = vunpack.c.h.b16 %v70
    %v185 = vunpack.c.l.b16 %v71
    %v186 = vunpack.c.h.b16 %v71
    %v187 = vunpack.c.l.b16 %v72
    %v188 = vunpack.c.h.b16 %v72
    %v189 = vunpack.c.l.b16 %v73
    %v190 = vunpack.c.h.b16 %v73
    %v191 = vunpack.c.l.b16 %v74
    %v192 = vunpack.c.h.b16 %v74
    %v193 = vunpack.c.l.b16 %v75
    %v194 = vunpack.c.h.b16 %v75
    %v195 = vunpack.c.l.b16 %v76
    %v196 = vunpack.c.h.b16 %v76
    %v197 = vunpack.c.l.b16 %v77
    %v198 = vunpack.c.h.b16 %v77
    %v199 = vunpack.c.l.b16 %v78
    %v200 = vunpack.c.h.b16 %v78
    %v201 = vunpack.c.l.b16 %v79
    %v202 = vunpack.c.h.b16 %v79
    %v203 = vunpack.c.l.b16 %v80
    %v204 = vunpack.c.h.b16 %v80
    %v205 = vunpack.c.l.b16 %v81
    %v206 = vunpack.c.h.b16 %v81
    %v207 = vunpack.c.l.b16 %v82
    %v208 = vunpack.c.h.b16 %v82
    %v209 = vunpack.c.l.b16 %v83
    %v210 = vunpack.c.h.b16 %v83
    %v211 = vunpack.c.l.b16 %v84
    %v212 = vunpack.c.h.b16 %v84
    %v213 = vunpack.c.l.b16 %v85
    %v214 = vunpack.c.h.b16 %v85
    %v215 = vunpack.c.l.b16 %v86
    %v216 = vunpack.c.h.b16 %v86
    %v217 = vunpack.c.l.b16 %v87
    %v218 = vunpack.c.h.b16 %v87
    %v219 = vunpack.c.l.b16 %v88
    %v220 = vunpack.c.h.b16 %v88
    %v221 = vunpack.c.l.b16 %v89
    %v222 = vunpack.c.h.b16 %v89
    %v223 = vunpack.c.l.b16 %v90
    %v224 = vunpack.c.h.b16 %v90
    %v225 = vunpack.c.l.b16 %v91
    %v226 = vunpack.c.h.b16 %v91
    %v227 = vunpack.c.l.b16 %v92
    %v228 = vunpack.c.h.b16 %v92
    %v229 = vunpack.c.l.b16 %v93
    %v230 = vunpack.c.h.b16 %v93
    %v231 = vunpack.c.l.b16 %v94
    %v232 = vunpack.c.h.b16 %v94
    %v233 = vpack.c.b16 %v177, %v169
    %v234 = vpack.c.b16 %v178, %v170
    %v235 = vpack.c.b16 %v179, %v171
    %v236 = vpack.c.b16 %v180, %v172
    %v237 = vpack.c.b16 %v181, %v173
    %v238 = vpack.c.b16 %v182, %v174
    %v239 = vpack.c.b16 %v183, %v175
    %v240 = vpack.c.b16 %v184, %v176
    %v241 = vpack.c.b16 %v193, %v185
    %v242 = vpack.c.b16 %v194, %v186
    %v243 = vpack.c.b16 %v195, %v187
    %v244 = vpack.c.b16 %v196, %v188
    %v245 = vpack.c.b16 %v197, %v189
    %v246 = vpack.c.b16 %v198, %v190
    %v247 = vpack.c.b16 %v199, %v191
    %v248 = vpack.c.b16 %v200, %v192
    %v249 = vpack.c.b16 %v209, %v201
    %v250 = vpack.c.b16 %v210, %v202
    %v251 = vpack.c.b16 %v211, %v203
    %v252 = vpack.c.b16 %v212, %v204
    %v253 = vpack.c.b16 %v213, %v205
    %v254 = vpack.c.b16 %v214, %v206
    %v255 = vpack.c.b16 %v215, %v207
    %v256 = vpack.c.b16 %v216, %v208
    %v257 = vpack.c.b16 %v225, %v217
    %v258 = vpack.c.b16 %v226, %v218
    %v259 = vpack.c.b16 %v227, %v219
    %v260 = vpack.c.b16 %v228, %v220
    %v261 = vpack.c.b16 %v229, %v221
    %v262 = vpack.c.b16 %v230, %v222
    %v263 = vpack.c.b16 %v231, %v223
    %v264 = vpack.c.b16 %v232, %v224
    %vm297 = vcmask 523264
    %v299 = vsel %vm297, %v62, 0
    %301 = vmatprep.subr.bf16.mxu0 %v234
    %302 = vmatpush1.bf16.msra.mxu0 %v233
    %303 = vmatprep.subr.bf16.mxu0 %v242
    %304 = vmatpush1.bf16.msra.mxu0 %v241
    %305 = vmatprep.subr.bf16.mxu0 %v250
    %306 = vmatpush1.bf16.msra.mxu0 %v249
    %307 = vmatprep.subr.bf16.mxu0 %v258
    %308 = vmatpush1.bf16.msra.mxu0 %v257
    %309 = vmatprep.subr.bf16.mxu0 0
    %310 = vmatpush1.bf16.msra.mxu0 0
    %311 = vmatprep.subr.bf16.mxu0 0
    %312 = vmatpush1.bf16.msra.mxu0 0
    %313 = vmatprep.subr.bf16.mxu0 0
    %314 = vmatpush1.bf16.msra.mxu0 0
    %315 = vmatprep.subr.bf16.mxu0 0
    %316 = vmatpush1.bf16.msra.mxu0 0
    %317 = vmatprep.subr.bf16.mxu0 0
    %318 = vmatpush1.bf16.msra.mxu0 0
    %319 = vmatprep.subr.bf16.mxu0 0
    %320 = vmatpush1.bf16.msra.mxu0 0
    %321 = vmatprep.subr.bf16.mxu0 0
    %322 = vmatpush1.bf16.msra.mxu0 0
    %323 = vmatprep.subr.bf16.mxu0 0
    %324 = vmatpush1.bf16.msra.mxu0 0
    %325 = vmatprep.subr.bf16.mxu0 0
    %326 = vmatpush1.bf16.msra.mxu0 0
    %327 = vmatprep.subr.bf16.mxu0 0
    %328 = vmatpush1.bf16.msra.mxu0 0
    %329 = vmatprep.subr.bf16.mxu0 0
    %330 = vmatpush1.bf16.msra.mxu0 0
    %331 = vmatprep.subr.bf16.mxu0 0
    %332 = vmatpush1.bf16.msra.mxu0 0
    %333 = vmatprep.mubr.bf16.mxu0 0
    %334 = vmatmul.mubr.bf16.gmra.mrb[0].mxu0 %v299
    %v335 = vpop.f32.mrb[0].mxu0
    %v336 = vadd.f32 %v100, %v335
    %v337 = vpop.f32.mrb[0].mxu0
    %v338 = vadd.f32 %v104, %v337
    %v339 = vpop.f32.mrb[0].mxu0
    %v340 = vpop.f32.mrb[0].mxu0
    %341 = vdwg.mxu0
    %342 = vmatprep.subr.bf16.mxu0 %v236
    %343 = vmatpush1.bf16.msra.mxu0 %v235
    %344 = vmatprep.subr.bf16.mxu0 %v244
    %345 = vmatpush1.bf16.msra.mxu0 %v243
    %346 = vmatprep.subr.bf16.mxu0 %v252
    %347 = vmatpush1.bf16.msra.mxu0 %v251
    %348 = vmatprep.subr.bf16.mxu0 %v260
    %349 = vmatpush1.bf16.msra.mxu0 %v259
    %350 = vmatprep.subr.bf16.mxu0 0
    %351 = vmatpush1.bf16.msra.mxu0 0
    %352 = vmatprep.subr.bf16.mxu0 0
    %353 = vmatpush1.bf16.msra.mxu0 0
    %354 = vmatprep.subr.bf16.mxu0 0
    %355 = vmatpush1.bf16.msra.mxu0 0
    %356 = vmatprep.subr.bf16.mxu0 0
    %357 = vmatpush1.bf16.msra.mxu0 0
    %358 = vmatprep.subr.bf16.mxu0 0
    %359 = vmatpush1.bf16.msra.mxu0 0
    %360 = vmatprep.subr.bf16.mxu0 0
    %361 = vmatpush1.bf16.msra.mxu0 0
    %362 = vmatprep.subr.bf16.mxu0 0
    %363 = vmatpush1.bf16.msra.mxu0 0
    %364 = vmatprep.subr.bf16.mxu0 0
    %365 = vmatpush1.bf16.msra.mxu0 0
    %366 = vmatprep.subr.bf16.mxu0 0
    %367 = vmatpush1.bf16.msra.mxu0 0
    %368 = vmatprep.subr.bf16.mxu0 0
    %369 = vmatpush1.bf16.msra.mxu0 0
    %370 = vmatprep.subr.bf16.mxu0 0
    %371 = vmatpush1.bf16.msra.mxu0 0
    %372 = vmatprep.subr.bf16.mxu0 0
    %373 = vmatpush1.bf16.msra.mxu0 0
    %374 = vmatprep.mubr.bf16.mxu0 0
    %375 = vmatmul.mubr.bf16.gmra.mrb[0].mxu0 %v299
    %v376 = vpop.f32.mrb[0].mxu0
    %v377 = vadd.f32 %v108, %v376
    %v378 = vpop.f32.mrb[0].mxu0
    %v379 = vadd.f32 %v112, %v378
    %v380 = vpop.f32.mrb[0].mxu0
    %v381 = vpop.f32.mrb[0].mxu0
    %382 = vdwg.mxu0
    %383 = vmatprep.subr.bf16.mxu0 %v238
    %384 = vmatpush1.bf16.msra.mxu0 %v237
    %385 = vmatprep.subr.bf16.mxu0 %v246
    %386 = vmatpush1.bf16.msra.mxu0 %v245
    %387 = vmatprep.subr.bf16.mxu0 %v254
    %388 = vmatpush1.bf16.msra.mxu0 %v253
    %389 = vmatprep.subr.bf16.mxu0 %v262
    %390 = vmatpush1.bf16.msra.mxu0 %v261
    %391 = vmatprep.subr.bf16.mxu0 0
    %392 = vmatpush1.bf16.msra.mxu0 0
    %393 = vmatprep.subr.bf16.mxu0 0
    %394 = vmatpush1.bf16.msra.mxu0 0
    %395 = vmatprep.subr.bf16.mxu0 0
    %396 = vmatpush1.bf16.msra.mxu0 0
    %397 = vmatprep.subr.bf16.mxu0 0
    %398 = vmatpush1.bf16.msra.mxu0 0
    %399 = vmatprep.subr.bf16.mxu0 0
    %400 = vmatpush1.bf16.msra.mxu0 0
    %401 = vmatprep.subr.bf16.mxu0 0
    %402 = vmatpush1.bf16.msra.mxu0 0
    %403 = vmatprep.subr.bf16.mxu0 0
    %404 = vmatpush1.bf16.msra.mxu0 0
    %405 = vmatprep.subr.bf16.mxu0 0
    %406 = vmatpush1.bf16.msra.mxu0 0
    %407 = vmatprep.subr.bf16.mxu0 0
    %408 = vmatpush1.bf16.msra.mxu0 0
    %409 = vmatprep.subr.bf16.mxu0 0
    %410 = vmatpush1.bf16.msra.mxu0 0
    %411 = vmatprep.subr.bf16.mxu0 0
    %412 = vmatpush1.bf16.msra.mxu0 0
    %413 = vmatprep.subr.bf16.mxu0 0
    %414 = vmatpush1.bf16.msra.mxu0 0
    %415 = vmatprep.mubr.bf16.mxu0 0
    %416 = vmatmul.mubr.bf16.gmra.mrb[0].mxu0 %v299
    %v417 = vpop.f32.mrb[0].mxu0
    %v418 = vadd.f32 %v116, %v417
    %v419 = vpop.f32.mrb[0].mxu0
    %v420 = vadd.f32 %v120, %v419
    %v421 = vpop.f32.mrb[0].mxu0
    %v422 = vpop.f32.mrb[0].mxu0
    %423 = vdwg.mxu0
    %424 = vmatprep.subr.bf16.mxu0 %v240
    %425 = vmatpush1.bf16.msra.mxu0 %v239
    %426 = vmatprep.subr.bf16.mxu0 %v248
    %427 = vmatpush1.bf16.msra.mxu0 %v247
    %428 = vmatprep.subr.bf16.mxu0 %v256
    %429 = vmatpush1.bf16.msra.mxu0 %v255
    %430 = vmatprep.subr.bf16.mxu0 %v264
    %431 = vmatpush1.bf16.msra.mxu0 %v263
    %432 = vmatprep.subr.bf16.mxu0 0
    %433 = vmatpush1.bf16.msra.mxu0 0
    %434 = vmatprep.subr.bf16.mxu0 0
    %435 = vmatpush1.bf16.msra.mxu0 0
    %436 = vmatprep.subr.bf16.mxu0 0
    %437 = vmatpush1.bf16.msra.mxu0 0
    %438 = vmatprep.subr.bf16.mxu0 0
    %439 = vmatpush1.bf16.msra.mxu0 0
    %440 = vmatprep.subr.bf16.mxu0 0
    %441 = vmatpush1.bf16.msra.mxu0 0
    %442 = vmatprep.subr.bf16.mxu0 0
    %443 = vmatpush1.bf16.msra.mxu0 0
    %444 = vmatprep.subr.bf16.mxu0 0
    %445 = vmatpush1.bf16.msra.mxu0 0
    %446 = vmatprep.subr.bf16.mxu0 0
    %447 = vmatpush1.bf16.msra.mxu0 0
    %448 = vmatprep.subr.bf16.mxu0 0
    %449 = vmatpush1.bf16.msra.mxu0 0
    %450 = vmatprep.subr.bf16.mxu0 0
    %451 = vmatpush1.bf16.msra.mxu0 0
    %452 = vmatprep.subr.bf16.mxu0 0
    %453 = vmatpush1.bf16.msra.mxu0 0
    %454 = vmatprep.subr.bf16.mxu0 0
    %455 = vmatpush1.bf16.msra.mxu0 0
    %456 = vmatprep.mubr.bf16.mxu0 0
    %457 = vmatmul.mubr.bf16.gmra.mrb[0].mxu0 %v299
    %v458 = vpop.f32.mrb[0].mxu0
    %v459 = vadd.f32 %v124, %v458
    %v460 = vpop.f32.mrb[0].mxu0
    %v461 = vadd.f32 %v128, %v460
    %v462 = vpop.f32.mrb[0].mxu0
    %v463 = vpop.f32.mrb[0].mxu0
    %464 = vdwg.mxu0
    %v465 = vmax.f32 %v336, 0.0
    %v466 = vmax.f32 %v338, 0.0
    %v467 = vmax.f32 %v377, 0.0
    %v468 = vmax.f32 %v379, 0.0
    %v469 = vmax.f32 %v418, 0.0
    %v470 = vmax.f32 %v420, 0.0
    %v471 = vmax.f32 %v459, 0.0
    %v472 = vmax.f32 %v461, 0.0
    %v473 = vpack.c.bf16 %v465, %v465
    %v474 = vpack.c.bf16 %v466, %v466
    %v475 = vpack.c.bf16 %v467, %v467
    %v476 = vpack.c.bf16 %v468, %v468
    %v477 = vpack.c.bf16 %v469, %v469
    %v478 = vpack.c.bf16 %v470, %v470
    %v479 = vpack.c.bf16 %v471, %v471
    %v480 = vpack.c.bf16 %v472, %v472
    %v481 = vld [vmem:[#allocation4] sm:$0xff]
    %v482 = vld [vmem:[#allocation4 + $0x8] sm:$0xff]
    %v483 = vld [vmem:[#allocation4 + $0x10] sm:$0xff]
    %v484 = vld [vmem:[#allocation4 + $0x18] sm:$0xff]
    %v485 = vld [vmem:[#allocation4 + $0x20] sm:$0xff]
    %v486 = vld [vmem:[#allocation4 + $0x28] sm:$0xff]
    %v487 = vld [vmem:[#allocation4 + $0x30] sm:$0xff]
    %v488 = vld [vmem:[#allocation4 + $0x38] sm:$0xff]
    %v489 = vld [vmem:[#allocation4 + $0x40] sm:$0xff]
    %v490 = vld [vmem:[#allocation4 + $0x48] sm:$0xff]
    %v491 = vld [vmem:[#allocation4 + $0x50] sm:$0xff]
    %v492 = vld [vmem:[#allocation4 + $0x58] sm:$0xff]
    %v493 = vld [vmem:[#allocation4 + $0x60] sm:$0xff]
    %v494 = vld [vmem:[#allocation4 + $0x68] sm:$0xff]
    %v495 = vld [vmem:[#allocation4 + $0x70] sm:$0xff]
    %v496 = vld [vmem:[#allocation4 + $0x78] sm:$0xff]
    %v497 = vld [vmem:[#allocation4 + $0x80] sm:$0xff]
    %v498 = vld [vmem:[#allocation4 + $0x88] sm:$0xff]
    %v499 = vld [vmem:[#allocation4 + $0x90] sm:$0xff]
    %v500 = vld [vmem:[#allocation4 + $0x98] sm:$0xff]
    %v501 = vld [vmem:[#allocation4 + $0xa0] sm:$0xff]
    %v502 = vld [vmem:[#allocation4 + $0xa8] sm:$0xff]
    %v503 = vld [vmem:[#allocation4 + $0xb0] sm:$0xff]
    %v504 = vld [vmem:[#allocation4 + $0xb8] sm:$0xff]
    %v505 = vld [vmem:[#allocation4 + $0xc0] sm:$0xff]
    %v506 = vld [vmem:[#allocation4 + $0xc8] sm:$0xff]
    %v507 = vld [vmem:[#allocation4 + $0xd0] sm:$0xff]
    %v508 = vld [vmem:[#allocation4 + $0xd8] sm:$0xff]
    %v509 = vld [vmem:[#allocation4 + $0xe0] sm:$0xff]
    %v510 = vld [vmem:[#allocation4 + $0xe8] sm:$0xff]
    %v511 = vld [vmem:[#allocation4 + $0xf0] sm:$0xff]
    %v512 = vld [vmem:[#allocation4 + $0xf8] sm:$0xff]
    %v513 = vld [vmem:[#allocation4 + $0x100] sm:$0xff]
    %v514 = vld [vmem:[#allocation4 + $0x108] sm:$0xff]
    %v515 = vld [vmem:[#allocation4 + $0x110] sm:$0xff]
    %v516 = vld [vmem:[#allocation4 + $0x118] sm:$0xff]
    %v517 = vld [vmem:[#allocation4 + $0x120] sm:$0xff]
    %v518 = vld [vmem:[#allocation4 + $0x128] sm:$0xff]
    %v519 = vld [vmem:[#allocation4 + $0x130] sm:$0xff]
    %v520 = vld [vmem:[#allocation4 + $0x138] sm:$0xff]
    %v521 = vld [vmem:[#allocation4 + $0x140] sm:$0xff]
    %v522 = vld [vmem:[#allocation4 + $0x148] sm:$0xff]
    %v523 = vld [vmem:[#allocation4 + $0x150] sm:$0xff]
    %v524 = vld [vmem:[#allocation4 + $0x158] sm:$0xff]
    %v525 = vld [vmem:[#allocation4 + $0x160] sm:$0xff]
    %v526 = vld [vmem:[#allocation4 + $0x168] sm:$0xff]
    %v527 = vld [vmem:[#allocation4 + $0x170] sm:$0xff]
    %v528 = vld [vmem:[#allocation4 + $0x178] sm:$0xff]
    %v529 = vld [vmem:[#allocation4 + $0x180] sm:$0xff]
    %v530 = vld [vmem:[#allocation4 + $0x188] sm:$0xff]
    %v531 = vld [vmem:[#allocation4 + $0x190] sm:$0xff]
    %v532 = vld [vmem:[#allocation4 + $0x198] sm:$0xff]
    %v533 = vld [vmem:[#allocation4 + $0x1a0] sm:$0xff]
    %v534 = vld [vmem:[#allocation4 + $0x1a8] sm:$0xff]
    %v535 = vld [vmem:[#allocation4 + $0x1b0] sm:$0xff]
    %v536 = vld [vmem:[#allocation4 + $0x1b8] sm:$0xff]
    %v537 = vld [vmem:[#allocation4 + $0x1c0] sm:$0xff]
    %v538 = vld [vmem:[#allocation4 + $0x1c8] sm:$0xff]
    %v539 = vld [vmem:[#allocation4 + $0x1d0] sm:$0xff]
    %v540 = vld [vmem:[#allocation4 + $0x1d8] sm:$0xff]
    %v541 = vld [vmem:[#allocation4 + $0x1e0] sm:$0xff]
    %v542 = vld [vmem:[#allocation4 + $0x1e8] sm:$0xff]
    %v543 = vld [vmem:[#allocation4 + $0x1f0] sm:$0xff]
    %v544 = vld [vmem:[#allocation4 + $0x1f8] sm:$0xff]
    %v545 = vld [vmem:[#allocation4 + $0x200] sm:$0xff]
    %v546 = vld [vmem:[#allocation4 + $0x208] sm:$0xff]
    %v547 = vld [vmem:[#allocation4 + $0x210] sm:$0xff]
    %v548 = vld [vmem:[#allocation4 + $0x218] sm:$0xff]
    %v549 = vld [vmem:[#allocation4 + $0x220] sm:$0xff]
    %v550 = vld [vmem:[#allocation4 + $0x228] sm:$0xff]
    %v551 = vld [vmem:[#allocation4 + $0x230] sm:$0xff]
    %v552 = vld [vmem:[#allocation4 + $0x238] sm:$0xff]
    %v553 = vld [vmem:[#allocation4 + $0x240] sm:$0xff]
    %v554 = vld [vmem:[#allocation4 + $0x248] sm:$0xff]
    %v555 = vld [vmem:[#allocation4 + $0x250] sm:$0xff]
    %v556 = vld [vmem:[#allocation4 + $0x258] sm:$0xff]
    %v557 = vld [vmem:[#allocation4 + $0x260] sm:$0xff]
    %v558 = vld [vmem:[#allocation4 + $0x268] sm:$0xff]
    %v559 = vld [vmem:[#allocation4 + $0x270] sm:$0xff]
    %v560 = vld [vmem:[#allocation4 + $0x278] sm:$0xff]
    %v561 = vld [vmem:[#allocation4 + $0x280] sm:$0xff]
    %v562 = vld [vmem:[#allocation4 + $0x288] sm:$0xff]
    %v563 = vld [vmem:[#allocation4 + $0x290] sm:$0xff]
    %v564 = vld [vmem:[#allocation4 + $0x298] sm:$0xff]
    %v565 = vld [vmem:[#allocation4 + $0x2a0] sm:$0xff]
    %v566 = vld [vmem:[#allocation4 + $0x2a8] sm:$0xff]
    %v567 = vld [vmem:[#allocation4 + $0x2b0] sm:$0xff]
    %v568 = vld [vmem:[#allocation4 + $0x2b8] sm:$0xff]
    %v569 = vld [vmem:[#allocation4 + $0x2c0] sm:$0xff]
    %v570 = vld [vmem:[#allocation4 + $0x2c8] sm:$0xff]
    %v571 = vld [vmem:[#allocation4 + $0x2d0] sm:$0xff]
    %v572 = vld [vmem:[#allocation4 + $0x2d8] sm:$0xff]
    %v573 = vld [vmem:[#allocation4 + $0x2e0] sm:$0xff]
    %v574 = vld [vmem:[#allocation4 + $0x2e8] sm:$0xff]
    %v575 = vld [vmem:[#allocation4 + $0x2f0] sm:$0xff]
    %v576 = vld [vmem:[#allocation4 + $0x2f8] sm:$0xff]
    %v577 = vld [vmem:[#allocation4 + $0x300] sm:$0xff]
    %v578 = vld [vmem:[#allocation4 + $0x308] sm:$0xff]
    %v579 = vld [vmem:[#allocation4 + $0x310] sm:$0xff]
    %v580 = vld [vmem:[#allocation4 + $0x318] sm:$0xff]
    %v581 = vld [vmem:[#allocation4 + $0x320] sm:$0xff]
    %v582 = vld [vmem:[#allocation4 + $0x328] sm:$0xff]
    %v583 = vld [vmem:[#allocation4 + $0x330] sm:$0xff]
    %v584 = vld [vmem:[#allocation4 + $0x338] sm:$0xff]
    %v585 = vld [vmem:[#allocation4 + $0x340] sm:$0xff]
    %v586 = vld [vmem:[#allocation4 + $0x348] sm:$0xff]
    %v587 = vld [vmem:[#allocation4 + $0x350] sm:$0xff]
    %v588 = vld [vmem:[#allocation4 + $0x358] sm:$0xff]
    %v589 = vld [vmem:[#allocation4 + $0x360] sm:$0xff]
    %v590 = vld [vmem:[#allocation4 + $0x368] sm:$0xff]
    %v591 = vld [vmem:[#allocation4 + $0x370] sm:$0xff]
    %v592 = vld [vmem:[#allocation4 + $0x378] sm:$0xff]
    %v593 = vld [vmem:[#allocation4 + $0x380] sm:$0xff]
    %v594 = vld [vmem:[#allocation4 + $0x388] sm:$0xff]
    %v595 = vld [vmem:[#allocation4 + $0x390] sm:$0xff]
    %v596 = vld [vmem:[#allocation4 + $0x398] sm:$0xff]
    %v597 = vld [vmem:[#allocation4 + $0x3a0] sm:$0xff]
    %v598 = vld [vmem:[#allocation4 + $0x3a8] sm:$0xff]
    %v599 = vld [vmem:[#allocation4 + $0x3b0] sm:$0xff]
    %v600 = vld [vmem:[#allocation4 + $0x3b8] sm:$0xff]
    %v601 = vld [vmem:[#allocation4 + $0x3c0] sm:$0xff]
    %v602 = vld [vmem:[#allocation4 + $0x3c8] sm:$0xff]
    %v603 = vld [vmem:[#allocation4 + $0x3d0] sm:$0xff]
    %v604 = vld [vmem:[#allocation4 + $0x3d8] sm:$0xff]
    %v605 = vld [vmem:[#allocation4 + $0x3e0] sm:$0xff]
    %v606 = vld [vmem:[#allocation4 + $0x3e8] sm:$0xff]
    %v607 = vld [vmem:[#allocation4 + $0x3f0] sm:$0xff]
    %v608 = vld [vmem:[#allocation4 + $0x3f8] sm:$0xff]
    %v609 = vld [vmem:[%s4] sm:$0x3]
    %v611 = vlaneseq
    %v612 = vshrl.u32 %v611, 7
    %v613 = vsub.s32 0, %v612
    %v614 = vrot.slane %v609, %v613
    %v615 = vlaneseq
    %v616 = vshrl.u32 %v615, 7
    %v617 = vsub.s32 1, %v616
    %v618 = vrot.slane %v609, %v617
    %v749 = vunpack.c.l.b16 %v481
    %v750 = vunpack.c.h.b16 %v481
    %v751 = vunpack.c.l.b16 %v482
    %v752 = vunpack.c.h.b16 %v482
    %v753 = vunpack.c.l.b16 %v483
    %v754 = vunpack.c.h.b16 %v483
    %v755 = vunpack.c.l.b16 %v484
    %v756 = vunpack.c.h.b16 %v484
    %v757 = vunpack.c.l.b16 %v485
    %v758 = vunpack.c.h.b16 %v485
    %v759 = vunpack.c.l.b16 %v486
    %v760 = vunpack.c.h.b16 %v486
    %v761 = vunpack.c.l.b16 %v487
    %v762 = vunpack.c.h.b16 %v487
    %v763 = vunpack.c.l.b16 %v488
    %v764 = vunpack.c.h.b16 %v488
    %v765 = vunpack.c.l.b16 %v489
    %v766 = vunpack.c.h.b16 %v489
    %v767 = vunpack.c.l.b16 %v490
    %v768 = vunpack.c.h.b16 %v490
    %v769 = vunpack.c.l.b16 %v491
    %v770 = vunpack.c.h.b16 %v491
    %v771 = vunpack.c.l.b16 %v492
    %v772 = vunpack.c.h.b16 %v492
    %v773 = vunpack.c.l.b16 %v493
    %v774 = vunpack.c.h.b16 %v493
    %v775 = vunpack.c.l.b16 %v494
    %v776 = vunpack.c.h.b16 %v494
    %v777 = vunpack.c.l.b16 %v495
    %v778 = vunpack.c.h.b16 %v495
    %v779 = vunpack.c.l.b16 %v496
    %v780 = vunpack.c.h.b16 %v496
    %v781 = vunpack.c.l.b16 %v497
    %v782 = vunpack.c.h.b16 %v497
    %v783 = vunpack.c.l.b16 %v498
    %v784 = vunpack.c.h.b16 %v498
    %v785 = vunpack.c.l.b16 %v499
    %v786 = vunpack.c.h.b16 %v499
    %v787 = vunpack.c.l.b16 %v500
    %v788 = vunpack.c.h.b16 %v500
    %v789 = vunpack.c.l.b16 %v501
    %v790 = vunpack.c.h.b16 %v501
    %v791 = vunpack.c.l.b16 %v502
    %v792 = vunpack.c.h.b16 %v502
    %v793 = vunpack.c.l.b16 %v503
    %v794 = vunpack.c.h.b16 %v503
    %v795 = vunpack.c.l.b16 %v504
    %v796 = vunpack.c.h.b16 %v504
    %v797 = vunpack.c.l.b16 %v505
    %v798 = vunpack.c.h.b16 %v505
    %v799 = vunpack.c.l.b16 %v506
    %v800 = vunpack.c.h.b16 %v506
    %v801 = vunpack.c.l.b16 %v507
    %v802 = vunpack.c.h.b16 %v507
    %v803 = vunpack.c.l.b16 %v508
    %v804 = vunpack.c.h.b16 %v508
    %v805 = vunpack.c.l.b16 %v509
    %v806 = vunpack.c.h.b16 %v509
    %v807 = vunpack.c.l.b16 %v510
    %v808 = vunpack.c.h.b16 %v510
    %v809 = vunpack.c.l.b16 %v511
    %v810 = vunpack.c.h.b16 %v511
    %v811 = vunpack.c.l.b16 %v512
    %v812 = vunpack.c.h.b16 %v512
    %v813 = vunpack.c.l.b16 %v513
    %v814 = vunpack.c.h.b16 %v513
    %v815 = vunpack.c.l.b16 %v514
    %v816 = vunpack.c.h.b16 %v514
    %v817 = vunpack.c.l.b16 %v515
    %v818 = vunpack.c.h.b16 %v515
    %v819 = vunpack.c.l.b16 %v516
    %v820 = vunpack.c.h.b16 %v516
    %v821 = vunpack.c.l.b16 %v517
    %v822 = vunpack.c.h.b16 %v517
    %v823 = vunpack.c.l.b16 %v518
    %v824 = vunpack.c.h.b16 %v518
    %v825 = vunpack.c.l.b16 %v519
    %v826 = vunpack.c.h.b16 %v519
    %v827 = vunpack.c.l.b16 %v520
    %v828 = vunpack.c.h.b16 %v520
    %v829 = vunpack.c.l.b16 %v521
    %v830 = vunpack.c.h.b16 %v521
    %v831 = vunpack.c.l.b16 %v522
    %v832 = vunpack.c.h.b16 %v522
    %v833 = vunpack.c.l.b16 %v523
    %v834 = vunpack.c.h.b16 %v523
    %v835 = vunpack.c.l.b16 %v524
    %v836 = vunpack.c.h.b16 %v524
    %v837 = vunpack.c.l.b16 %v525
    %v838 = vunpack.c.h.b16 %v525
    %v839 = vunpack.c.l.b16 %v526
    %v840 = vunpack.c.h.b16 %v526
    %v841 = vunpack.c.l.b16 %v527
    %v842 = vunpack.c.h.b16 %v527
    %v843 = vunpack.c.l.b16 %v528
    %v844 = vunpack.c.h.b16 %v528
    %v845 = vunpack.c.l.b16 %v529
    %v846 = vunpack.c.h.b16 %v529
    %v847 = vunpack.c.l.b16 %v530
    %v848 = vunpack.c.h.b16 %v530
    %v849 = vunpack.c.l.b16 %v531
    %v850 = vunpack.c.h.b16 %v531
    %v851 = vunpack.c.l.b16 %v532
    %v852 = vunpack.c.h.b16 %v532
    %v853 = vunpack.c.l.b16 %v533
    %v854 = vunpack.c.h.b16 %v533
    %v855 = vunpack.c.l.b16 %v534
    %v856 = vunpack.c.h.b16 %v534
    %v857 = vunpack.c.l.b16 %v535
    %v858 = vunpack.c.h.b16 %v535
    %v859 = vunpack.c.l.b16 %v536
    %v860 = vunpack.c.h.b16 %v536
    %v861 = vunpack.c.l.b16 %v537
    %v862 = vunpack.c.h.b16 %v537
    %v863 = vunpack.c.l.b16 %v538
    %v864 = vunpack.c.h.b16 %v538
    %v865 = vunpack.c.l.b16 %v539
    %v866 = vunpack.c.h.b16 %v539
    %v867 = vunpack.c.l.b16 %v540
    %v868 = vunpack.c.h.b16 %v540
    %v869 = vunpack.c.l.b16 %v541
    %v870 = vunpack.c.h.b16 %v541
    %v871 = vunpack.c.l.b16 %v542
    %v872 = vunpack.c.h.b16 %v542
    %v873 = vunpack.c.l.b16 %v543
    %v874 = vunpack.c.h.b16 %v543
    %v875 = vunpack.c.l.b16 %v544
    %v876 = vunpack.c.h.b16 %v544
    %v877 = vunpack.c.l.b16 %v545
    %v878 = vunpack.c.h.b16 %v545
    %v879 = vunpack.c.l.b16 %v546
    %v880 = vunpack.c.h.b16 %v546
    %v881 = vunpack.c.l.b16 %v547
    %v882 = vunpack.c.h.b16 %v547
    %v883 = vunpack.c.l.b16 %v548
    %v884 = vunpack.c.h.b16 %v548
    %v885 = vunpack.c.l.b16 %v549
    %v886 = vunpack.c.h.b16 %v549
    %v887 = vunpack.c.l.b16 %v550
    %v888 = vunpack.c.h.b16 %v550
    %v889 = vunpack.c.l.b16 %v551
    %v890 = vunpack.c.h.b16 %v551
    %v891 = vunpack.c.l.b16 %v552
    %v892 = vunpack.c.h.b16 %v552
    %v893 = vunpack.c.l.b16 %v553
    %v894 = vunpack.c.h.b16 %v553
    %v895 = vunpack.c.l.b16 %v554
    %v896 = vunpack.c.h.b16 %v554
    %v897 = vunpack.c.l.b16 %v555
    %v898 = vunpack.c.h.b16 %v555
    %v899 = vunpack.c.l.b16 %v556
    %v900 = vunpack.c.h.b16 %v556
    %v901 = vunpack.c.l.b16 %v557
    %v902 = vunpack.c.h.b16 %v557
    %v903 = vunpack.c.l.b16 %v558
    %v904 = vunpack.c.h.b16 %v558
    %v905 = vunpack.c.l.b16 %v559
    %v906 = vunpack.c.h.b16 %v559
    %v907 = vunpack.c.l.b16 %v560
    %v908 = vunpack.c.h.b16 %v560
    %v909 = vunpack.c.l.b16 %v561
    %v910 = vunpack.c.h.b16 %v561
    %v911 = vunpack.c.l.b16 %v562
    %v912 = vunpack.c.h.b16 %v562
    %v913 = vunpack.c.l.b16 %v563
    %v914 = vunpack.c.h.b16 %v563
    %v915 = vunpack.c.l.b16 %v564
    %v916 = vunpack.c.h.b16 %v564
    %v917 = vunpack.c.l.b16 %v565
    %v918 = vunpack.c.h.b16 %v565
    %v919 = vunpack.c.l.b16 %v566
    %v920 = vunpack.c.h.b16 %v566
    %v921 = vunpack.c.l.b16 %v567
    %v922 = vunpack.c.h.b16 %v567
    %v923 = vunpack.c.l.b16 %v568
    %v924 = vunpack.c.h.b16 %v568
    %v925 = vunpack.c.l.b16 %v569
    %v926 = vunpack.c.h.b16 %v569
    %v927 = vunpack.c.l.b16 %v570
    %v928 = vunpack.c.h.b16 %v570
    %v929 = vunpack.c.l.b16 %v571
    %v930 = vunpack.c.h.b16 %v571
    %v931 = vunpack.c.l.b16 %v572
    %v932 = vunpack.c.h.b16 %v572
    %v933 = vunpack.c.l.b16 %v573
    %v934 = vunpack.c.h.b16 %v573
    %v935 = vunpack.c.l.b16 %v574
    %v936 = vunpack.c.h.b16 %v574
    %v937 = vunpack.c.l.b16 %v575
    %v938 = vunpack.c.h.b16 %v575
    %v939 = vunpack.c.l.b16 %v576
    %v940 = vunpack.c.h.b16 %v576
    %v941 = vunpack.c.l.b16 %v577
    %v942 = vunpack.c.h.b16 %v577
    %v943 = vunpack.c.l.b16 %v578
    %v944 = vunpack.c.h.b16 %v578
    %v945 = vunpack.c.l.b16 %v579
    %v946 = vunpack.c.h.b16 %v579
    %v947 = vunpack.c.l.b16 %v580
    %v948 = vunpack.c.h.b16 %v580
    %v949 = vunpack.c.l.b16 %v581
    %v950 = vunpack.c.h.b16 %v581
    %v951 = vunpack.c.l.b16 %v582
    %v952 = vunpack.c.h.b16 %v582
    %v953 = vunpack.c.l.b16 %v583
    %v954 = vunpack.c.h.b16 %v583
    %v955 = vunpack.c.l.b16 %v584
    %v956 = vunpack.c.h.b16 %v584
    %v957 = vunpack.c.l.b16 %v585
    %v958 = vunpack.c.h.b16 %v585
    %v959 = vunpack.c.l.b16 %v586
    %v960 = vunpack.c.h.b16 %v586
    %v961 = vunpack.c.l.b16 %v587
    %v962 = vunpack.c.h.b16 %v587
    %v963 = vunpack.c.l.b16 %v588
    %v964 = vunpack.c.h.b16 %v588
    %v965 = vunpack.c.l.b16 %v589
    %v966 = vunpack.c.h.b16 %v589
    %v967 = vunpack.c.l.b16 %v590
    %v968 = vunpack.c.h.b16 %v590
    %v969 = vunpack.c.l.b16 %v591
    %v970 = vunpack.c.h.b16 %v591
    %v971 = vunpack.c.l.b16 %v592
    %v972 = vunpack.c.h.b16 %v592
    %v973 = vunpack.c.l.b16 %v593
    %v974 = vunpack.c.h.b16 %v593
    %v975 = vunpack.c.l.b16 %v594
    %v976 = vunpack.c.h.b16 %v594
    %v977 = vunpack.c.l.b16 %v595
    %v978 = vunpack.c.h.b16 %v595
    %v979 = vunpack.c.l.b16 %v596
    %v980 = vunpack.c.h.b16 %v596
    %v981 = vunpack.c.l.b16 %v597
    %v982 = vunpack.c.h.b16 %v597
    %v983 = vunpack.c.l.b16 %v598
    %v984 = vunpack.c.h.b16 %v598
    %v985 = vunpack.c.l.b16 %v599
    %v986 = vunpack.c.h.b16 %v599
    %v987 = vunpack.c.l.b16 %v600
    %v988 = vunpack.c.h.b16 %v600
    %v989 = vunpack.c.l.b16 %v601
    %v990 = vunpack.c.h.b16 %v601
    %v991 = vunpack.c.l.b16 %v602
    %v992 = vunpack.c.h.b16 %v602
    %v993 = vunpack.c.l.b16 %v603
    %v994 = vunpack.c.h.b16 %v603
    %v995 = vunpack.c.l.b16 %v604
    %v996 = vunpack.c.h.b16 %v604
    %v997 = vunpack.c.l.b16 %v605
    %v998 = vunpack.c.h.b16 %v605
    %v999 = vunpack.c.l.b16 %v606
    %v1000 = vunpack.c.h.b16 %v606
    %v1001 = vunpack.c.l.b16 %v607
    %v1002 = vunpack.c.h.b16 %v607
    %v1003 = vunpack.c.l.b16 %v608
    %v1004 = vunpack.c.h.b16 %v608
    %v1005 = vpack.c.b16 %v751, %v749
    %v1006 = vpack.c.b16 %v752, %v750
    %v1007 = vpack.c.b16 %v755, %v753
    %v1008 = vpack.c.b16 %v756, %v754
    %v1009 = vpack.c.b16 %v759, %v757
    %v1010 = vpack.c.b16 %v760, %v758
    %v1011 = vpack.c.b16 %v763, %v761
    %v1012 = vpack.c.b16 %v764, %v762
    %v1013 = vpack.c.b16 %v767, %v765
    %v1014 = vpack.c.b16 %v768, %v766
    %v1015 = vpack.c.b16 %v771, %v769
    %v1016 = vpack.c.b16 %v772, %v770
    %v1017 = vpack.c.b16 %v775, %v773
    %v1018 = vpack.c.b16 %v776, %v774
    %v1019 = vpack.c.b16 %v779, %v777
    %v1020 = vpack.c.b16 %v780, %v778
    %v1021 = vpack.c.b16 %v783, %v781
    %v1022 = vpack.c.b16 %v784, %v782
    %v1023 = vpack.c.b16 %v787, %v785
    %v1024 = vpack.c.b16 %v788, %v786
    %v1025 = vpack.c.b16 %v791, %v789
    %v1026 = vpack.c.b16 %v792, %v790
    %v1027 = vpack.c.b16 %v795, %v793
    %v1028 = vpack.c.b16 %v796, %v794
    %v1029 = vpack.c.b16 %v799, %v797
    %v1030 = vpack.c.b16 %v800, %v798
    %v1031 = vpack.c.b16 %v803, %v801
    %v1032 = vpack.c.b16 %v804, %v802
    %v1033 = vpack.c.b16 %v807, %v805
    %v1034 = vpack.c.b16 %v808, %v806
    %v1035 = vpack.c.b16 %v811, %v809
    %v1036 = vpack.c.b16 %v812, %v810
    %v1037 = vpack.c.b16 %v815, %v813
    %v1038 = vpack.c.b16 %v816, %v814
    %v1039 = vpack.c.b16 %v819, %v817
    %v1040 = vpack.c.b16 %v820, %v818
    %v1041 = vpack.c.b16 %v823, %v821
    %v1042 = vpack.c.b16 %v824, %v822
    %v1043 = vpack.c.b16 %v827, %v825
    %v1044 = vpack.c.b16 %v828, %v826
    %v1045 = vpack.c.b16 %v831, %v829
    %v1046 = vpack.c.b16 %v832, %v830
    %v1047 = vpack.c.b16 %v835, %v833
    %v1048 = vpack.c.b16 %v836, %v834
    %v1049 = vpack.c.b16 %v839, %v837
    %v1050 = vpack.c.b16 %v840, %v838
    %v1051 = vpack.c.b16 %v843, %v841
    %v1052 = vpack.c.b16 %v844, %v842
    %v1053 = vpack.c.b16 %v847, %v845
    %v1054 = vpack.c.b16 %v848, %v846
    %v1055 = vpack.c.b16 %v851, %v849
    %v1056 = vpack.c.b16 %v852, %v850
    %v1057 = vpack.c.b16 %v855, %v853
    %v1058 = vpack.c.b16 %v856, %v854
    %v1059 = vpack.c.b16 %v859, %v857
    %v1060 = vpack.c.b16 %v860, %v858
    %v1061 = vpack.c.b16 %v863, %v861
    %v1062 = vpack.c.b16 %v864, %v862
    %v1063 = vpack.c.b16 %v867, %v865
    %v1064 = vpack.c.b16 %v868, %v866
    %v1065 = vpack.c.b16 %v871, %v869
    %v1066 = vpack.c.b16 %v872, %v870
    %v1067 = vpack.c.b16 %v875, %v873
    %v1068 = vpack.c.b16 %v876, %v874
    %v1069 = vpack.c.b16 %v879, %v877
    %v1070 = vpack.c.b16 %v880, %v878
    %v1071 = vpack.c.b16 %v883, %v881
    %v1072 = vpack.c.b16 %v884, %v882
    %v1073 = vpack.c.b16 %v887, %v885
    %v1074 = vpack.c.b16 %v888, %v886
    %v1075 = vpack.c.b16 %v891, %v889
    %v1076 = vpack.c.b16 %v892, %v890
    %v1077 = vpack.c.b16 %v895, %v893
    %v1078 = vpack.c.b16 %v896, %v894
    %v1079 = vpack.c.b16 %v899, %v897
    %v1080 = vpack.c.b16 %v900, %v898
    %v1081 = vpack.c.b16 %v903, %v901
    %v1082 = vpack.c.b16 %v904, %v902
    %v1083 = vpack.c.b16 %v907, %v905
    %v1084 = vpack.c.b16 %v908, %v906
    %v1085 = vpack.c.b16 %v911, %v909
    %v1086 = vpack.c.b16 %v912, %v910
    %v1087 = vpack.c.b16 %v915, %v913
    %v1088 = vpack.c.b16 %v916, %v914
    %v1089 = vpack.c.b16 %v919, %v917
    %v1090 = vpack.c.b16 %v920, %v918
    %v1091 = vpack.c.b16 %v923, %v921
    %v1092 = vpack.c.b16 %v924, %v922
    %v1093 = vpack.c.b16 %v927, %v925
    %v1094 = vpack.c.b16 %v928, %v926
    %v1095 = vpack.c.b16 %v931, %v929
    %v1096 = vpack.c.b16 %v932, %v930
    %v1097 = vpack.c.b16 %v935, %v933
    %v1098 = vpack.c.b16 %v936, %v934
    %v1099 = vpack.c.b16 %v939, %v937
    %v1100 = vpack.c.b16 %v940, %v938
    %v1101 = vpack.c.b16 %v943, %v941
    %v1102 = vpack.c.b16 %v944, %v942
    %v1103 = vpack.c.b16 %v947, %v945
    %v1104 = vpack.c.b16 %v948, %v946
    %v1105 = vpack.c.b16 %v951, %v949
    %v1106 = vpack.c.b16 %v952, %v950
    %v1107 = vpack.c.b16 %v955, %v953
    %v1108 = vpack.c.b16 %v956, %v954
    %v1109 = vpack.c.b16 %v959, %v957
    %v1110 = vpack.c.b16 %v960, %v958
    %v1111 = vpack.c.b16 %v963, %v961
    %v1112 = vpack.c.b16 %v964, %v962
    %v1113 = vpack.c.b16 %v967, %v965
    %v1114 = vpack.c.b16 %v968, %v966
    %v1115 = vpack.c.b16 %v971, %v969
    %v1116 = vpack.c.b16 %v972, %v970
    %v1117 = vpack.c.b16 %v975, %v973
    %v1118 = vpack.c.b16 %v976, %v974
    %v1119 = vpack.c.b16 %v979, %v977
    %v1120 = vpack.c.b16 %v980, %v978
    %v1121 = vpack.c.b16 %v983, %v981
    %v1122 = vpack.c.b16 %v984, %v982
    %v1123 = vpack.c.b16 %v987, %v985
    %v1124 = vpack.c.b16 %v988, %v986
    %v1125 = vpack.c.b16 %v991, %v989
    %v1126 = vpack.c.b16 %v992, %v990
    %v1127 = vpack.c.b16 %v995, %v993
    %v1128 = vpack.c.b16 %v996, %v994
    %v1129 = vpack.c.b16 %v999, %v997
    %v1130 = vpack.c.b16 %v1000, %v998
    %v1131 = vpack.c.b16 %v1003, %v1001
    %v1132 = vpack.c.b16 %v1004, %v1002
    %1261 = vmatprep.subr.bf16.mxu0 %v1006
    %1262 = vmatpush1.bf16.msra.mxu0 %v1005
    %1263 = vmatprep.subr.bf16.mxu0 %v1008
    %1264 = vmatpush1.bf16.msra.mxu0 %v1007
    %1265 = vmatprep.subr.bf16.mxu0 %v1010
    %1266 = vmatpush1.bf16.msra.mxu0 %v1009
    %1267 = vmatprep.subr.bf16.mxu0 %v1012
    %1268 = vmatpush1.bf16.msra.mxu0 %v1011
    %1269 = vmatprep.subr.bf16.mxu0 %v1014
    %1270 = vmatpush1.bf16.msra.mxu0 %v1013
    %1271 = vmatprep.subr.bf16.mxu0 %v1016
    %1272 = vmatpush1.bf16.msra.mxu0 %v1015
    %1273 = vmatprep.subr.bf16.mxu0 %v1018
    %1274 = vmatpush1.bf16.msra.mxu0 %v1017
    %1275 = vmatprep.subr.bf16.mxu0 %v1020
    %1276 = vmatpush1.bf16.msra.mxu0 %v1019
    %1277 = vmatprep.subr.bf16.mxu0 %v1022
    %1278 = vmatpush1.bf16.msra.mxu0 %v1021
    %1279 = vmatprep.subr.bf16.mxu0 %v1024
    %1280 = vmatpush1.bf16.msra.mxu0 %v1023
    %1281 = vmatprep.subr.bf16.mxu0 %v1026
    %1282 = vmatpush1.bf16.msra.mxu0 %v1025
    %1283 = vmatprep.subr.bf16.mxu0 %v1028
    %1284 = vmatpush1.bf16.msra.mxu0 %v1027
    %1285 = vmatprep.subr.bf16.mxu0 %v1030
    %1286 = vmatpush1.bf16.msra.mxu0 %v1029
    %1287 = vmatprep.subr.bf16.mxu0 %v1032
    %1288 = vmatpush1.bf16.msra.mxu0 %v1031
    %1289 = vmatprep.subr.bf16.mxu0 %v1034
    %1290 = vmatpush1.bf16.msra.mxu0 %v1033
    %1291 = vmatprep.subr.bf16.mxu0 %v1036
    %1292 = vmatpush1.bf16.msra.mxu0 %v1035
    %1293 = vmatprep.mubr.bf16.mxu0 %v474
    %1294 = vmatmul.mubr.bf16.gmra.mrb[0].mxu0 %v473
    %v1295 = vpop.f32.mrb[0].mxu0
    %v1296 = vadd.f32 %v614, %v1295
    %v1297 = vpop.f32.mrb[0].mxu0
    %v1298 = vadd.f32 %v618, %v1297
    %v1299 = vpop.f32.mrb[0].mxu0
    %v1300 = vpop.f32.mrb[0].mxu0
    %1301 = vdwg.mxu0
    %1302 = vmatprep.subr.bf16.mxu0 %v1038
    %1303 = vmatpush1.bf16.msra.mxu0 %v1037
    %1304 = vmatprep.subr.bf16.mxu0 %v1040
    %1305 = vmatpush1.bf16.msra.mxu0 %v1039
    %1306 = vmatprep.subr.bf16.mxu0 %v1042
    %1307 = vmatpush1.bf16.msra.mxu0 %v1041
    %1308 = vmatprep.subr.bf16.mxu0 %v1044
    %1309 = vmatpush1.bf16.msra.mxu0 %v1043
    %1310 = vmatprep.subr.bf16.mxu0 %v1046
    %1311 = vmatpush1.bf16.msra.mxu0 %v1045
    %1312 = vmatprep.subr.bf16.mxu0 %v1048
    %1313 = vmatpush1.bf16.msra.mxu0 %v1047
    %1314 = vmatprep.subr.bf16.mxu0 %v1050
    %1315 = vmatpush1.bf16.msra.mxu0 %v1049
    %1316 = vmatprep.subr.bf16.mxu0 %v1052
    %1317 = vmatpush1.bf16.msra.mxu0 %v1051
    %1318 = vmatprep.subr.bf16.mxu0 %v1054
    %1319 = vmatpush1.bf16.msra.mxu0 %v1053
    %1320 = vmatprep.subr.bf16.mxu0 %v1056
    %1321 = vmatpush1.bf16.msra.mxu0 %v1055
    %1322 = vmatprep.subr.bf16.mxu0 %v1058
    %1323 = vmatpush1.bf16.msra.mxu0 %v1057
    %1324 = vmatprep.subr.bf16.mxu0 %v1060
    %1325 = vmatpush1.bf16.msra.mxu0 %v1059
    %1326 = vmatprep.subr.bf16.mxu0 %v1062
    %1327 = vmatpush1.bf16.msra.mxu0 %v1061
    %1328 = vmatprep.subr.bf16.mxu0 %v1064
    %1329 = vmatpush1.bf16.msra.mxu0 %v1063
    %1330 = vmatprep.subr.bf16.mxu0 %v1066
    %1331 = vmatpush1.bf16.msra.mxu0 %v1065
    %1332 = vmatprep.subr.bf16.mxu0 %v1068
    %1333 = vmatpush1.bf16.msra.mxu0 %v1067
    %1334 = vmatprep.mubr.bf16.mxu0 %v476
    %1335 = vmatmul.mubr.bf16.gmra.mrb[0].mxu0 %v475
    %v1336 = vpop.f32.mrb[0].mxu0
    %v1337 = vadd.f32 %v1296, %v1336
    %v1338 = vpop.f32.mrb[0].mxu0
    %v1339 = vadd.f32 %v1298, %v1338
    %v1340 = vpop.f32.mrb[0].mxu0
    %v1341 = vpop.f32.mrb[0].mxu0
    %1342 = vdwg.mxu0
    %1343 = vmatprep.subr.bf16.mxu0 %v1070
    %1344 = vmatpush1.bf16.msra.mxu0 %v1069
    %1345 = vmatprep.subr.bf16.mxu0 %v1072
    %1346 = vmatpush1.bf16.msra.mxu0 %v1071
    %1347 = vmatprep.subr.bf16.mxu0 %v1074
    %1348 = vmatpush1.bf16.msra.mxu0 %v1073
    %1349 = vmatprep.subr.bf16.mxu0 %v1076
    %1350 = vmatpush1.bf16.msra.mxu0 %v1075
    %1351 = vmatprep.subr.bf16.mxu0 %v1078
    %1352 = vmatpush1.bf16.msra.mxu0 %v1077
    %1353 = vmatprep.subr.bf16.mxu0 %v1080
    %1354 = vmatpush1.bf16.msra.mxu0 %v1079
    %1355 = vmatprep.subr.bf16.mxu0 %v1082
    %1356 = vmatpush1.bf16.msra.mxu0 %v1081
    %1357 = vmatprep.subr.bf16.mxu0 %v1084
    %1358 = vmatpush1.bf16.msra.mxu0 %v1083
    %1359 = vmatprep.subr.bf16.mxu0 %v1086
    %1360 = vmatpush1.bf16.msra.mxu0 %v1085
    %1361 = vmatprep.subr.bf16.mxu0 %v1088
    %1362 = vmatpush1.bf16.msra.mxu0 %v1087
    %1363 = vmatprep.subr.bf16.mxu0 %v1090
    %1364 = vmatpush1.bf16.msra.mxu0 %v1089
    %1365 = vmatprep.subr.bf16.mxu0 %v1092
    %1366 = vmatpush1.bf16.msra.mxu0 %v1091
    %1367 = vmatprep.subr.bf16.mxu0 %v1094
    %1368 = vmatpush1.bf16.msra.mxu0 %v1093
    %1369 = vmatprep.subr.bf16.mxu0 %v1096
    %1370 = vmatpush1.bf16.msra.mxu0 %v1095
    %1371 = vmatprep.subr.bf16.mxu0 %v1098
    %1372 = vmatpush1.bf16.msra.mxu0 %v1097
    %1373 = vmatprep.subr.bf16.mxu0 %v1100
    %1374 = vmatpush1.bf16.msra.mxu0 %v1099
    %1375 = vmatprep.mubr.bf16.mxu0 %v478
    %1376 = vmatmul.mubr.bf16.gmra.mrb[0].mxu0 %v477
    %v1377 = vpop.f32.mrb[0].mxu0
    %v1378 = vadd.f32 %v1337, %v1377
    %v1379 = vpop.f32.mrb[0].mxu0
    %v1380 = vadd.f32 %v1339, %v1379
    %v1381 = vpop.f32.mrb[0].mxu0
    %v1382 = vpop.f32.mrb[0].mxu0
    %1383 = vdwg.mxu0
    %1384 = vmatprep.subr.bf16.mxu0 %v1102
    %1385 = vmatpush1.bf16.msra.mxu0 %v1101
    %1386 = vmatprep.subr.bf16.mxu0 %v1104
    %1387 = vmatpush1.bf16.msra.mxu0 %v1103
    %1388 = vmatprep.subr.bf16.mxu0 %v1106
    %1389 = vmatpush1.bf16.msra.mxu0 %v1105
    %1390 = vmatprep.subr.bf16.mxu0 %v1108
    %1391 = vmatpush1.bf16.msra.mxu0 %v1107
    %1392 = vmatprep.subr.bf16.mxu0 %v1110
    %1393 = vmatpush1.bf16.msra.mxu0 %v1109
    %1394 = vmatprep.subr.bf16.mxu0 %v1112
    %1395 = vmatpush1.bf16.msra.mxu0 %v1111
    %1396 = vmatprep.subr.bf16.mxu0 %v1114
    %1397 = vmatpush1.bf16.msra.mxu0 %v1113
    %1398 = vmatprep.subr.bf16.mxu0 %v1116
    %1399 = vmatpush1.bf16.msra.mxu0 %v1115
    %1400 = vmatprep.subr.bf16.mxu0 %v1118
    %1401 = vmatpush1.bf16.msra.mxu0 %v1117
    %1402 = vmatprep.subr.bf16.mxu0 %v1120
    %1403 = vmatpush1.bf16.msra.mxu0 %v1119
    %1404 = vmatprep.subr.bf16.mxu0 %v1122
    %1405 = vmatpush1.bf16.msra.mxu0 %v1121
    %1406 = vmatprep.subr.bf16.mxu0 %v1124
    %1407 = vmatpush1.bf16.msra.mxu0 %v1123
    %1408 = vmatprep.subr.bf16.mxu0 %v1126
    %1409 = vmatpush1.bf16.msra.mxu0 %v1125
    %1410 = vmatprep.subr.bf16.mxu0 %v1128
    %1411 = vmatpush1.bf16.msra.mxu0 %v1127
    %1412 = vmatprep.subr.bf16.mxu0 %v1130
    %1413 = vmatpush1.bf16.msra.mxu0 %v1129
    %1414 = vmatprep.subr.bf16.mxu0 %v1132
    %1415 = vmatpush1.bf16.msra.mxu0 %v1131
    %1416 = vmatprep.mubr.bf16.mxu0 %v480
    %1417 = vmatmul.mubr.bf16.gmra.mrb[0].mxu0 %v479
    %v1418 = vpop.f32.mrb[0].mxu0
    %v1419 = vadd.f32 %v1378, %v1418
    %v1420 = vpop.f32.mrb[0].mxu0
    %v1421 = vadd.f32 %v1380, %v1420
    %v1422 = vpop.f32.mrb[0].mxu0
    %v1423 = vpop.f32.mrb[0].mxu0
    %1424 = vdwg.mxu0
    %v1425 = vmax.f32 %v1419, 0.0
    %v1426 = vmax.f32 %v1421, 0.0
    %v1427 = vpack.c.bf16 %v1425, %v1425
    %v1428 = vpack.c.bf16 %v1426, %v1426
    %v1429 = vld [vmem:[%s5] sm:$0xf]
    %v1430 = vld [vmem:[%s5 + $0x4] sm:$0xf]
    %v1431 = vld [vmem:[%s5 + $0x8] sm:$0xf]
    %v1432 = vld [vmem:[%s5 + $0xc] sm:$0xf]
    %v1433 = vld [vmem:[%s5 + $0x10] sm:$0xf]
    %v1434 = vld [vmem:[%s5 + $0x14] sm:$0xf]
    %v1435 = vld [vmem:[%s5 + $0x18] sm:$0xf]
    %v1436 = vld [vmem:[%s5 + $0x1c] sm:$0xf]
    %v1437 = vld [vmem:[%s5 + $0x20] sm:$0xf]
    %v1438 = vld [vmem:[%s5 + $0x24] sm:$0xf]
    %v1439 = vld [vmem:[%s5 + $0x28] sm:$0xf]
    %v1440 = vld [vmem:[%s5 + $0x2c] sm:$0xf]
    %v1441 = vld [vmem:[%s5 + $0x30] sm:$0xf]
    %v1442 = vld [vmem:[%s5 + $0x34] sm:$0xf]
    %v1443 = vld [vmem:[%s5 + $0x38] sm:$0xf]
    %v1444 = vld [vmem:[%s5 + $0x3c] sm:$0xf]
    %v1445 = vld [vmem:[%s5 + $0x40] sm:$0xf]
    %v1446 = vld [vmem:[%s5 + $0x44] sm:$0xf]
    %v1447 = vld [vmem:[%s5 + $0x48] sm:$0xf]
    %v1448 = vld [vmem:[%s5 + $0x4c] sm:$0xf]
    %v1449 = vld [vmem:[%s5 + $0x50] sm:$0xf]
    %v1450 = vld [vmem:[%s5 + $0x54] sm:$0xf]
    %v1451 = vld [vmem:[%s5 + $0x58] sm:$0xf]
    %v1452 = vld [vmem:[%s5 + $0x5c] sm:$0xf]
    %v1453 = vld [vmem:[%s5 + $0x60] sm:$0xf]
    %v1454 = vld [vmem:[%s5 + $0x64] sm:$0xf]
    %v1455 = vld [vmem:[%s5 + $0x68] sm:$0xf]
    %v1456 = vld [vmem:[%s5 + $0x6c] sm:$0xf]
    %v1457 = vld [vmem:[%s5 + $0x70] sm:$0xf]
    %v1458 = vld [vmem:[%s5 + $0x74] sm:$0xf]
    %v1459 = vld [vmem:[%s5 + $0x78] sm:$0xf]
    %v1460 = vld [vmem:[%s5 + $0x7c] sm:$0xf]
    %v1461 = vld [vmem:[%s6] sm:$0x1]
    %v1463 = vlaneseq
    %v1464 = vshrl.u32 %v1463, 7
    %v1465 = vsub.s32 0, %v1464
    %v1466 = vrot.slane %v1461, %v1465
    %v1500 = vunpack.c.l.b16 %v1429
    %v1501 = vunpack.c.l.b16 %v1430
    %v1502 = vunpack.c.l.b16 %v1431
    %v1503 = vunpack.c.l.b16 %v1432
    %v1504 = vunpack.c.l.b16 %v1433
    %v1505 = vunpack.c.l.b16 %v1434
    %v1506 = vunpack.c.l.b16 %v1435
    %v1507 = vunpack.c.l.b16 %v1436
    %v1508 = vunpack.c.l.b16 %v1437
    %v1509 = vunpack.c.l.b16 %v1438
    %v1510 = vunpack.c.l.b16 %v1439
    %v1511 = vunpack.c.l.b16 %v1440
    %v1512 = vunpack.c.l.b16 %v1441
    %v1513 = vunpack.c.l.b16 %v1442
    %v1514 = vunpack.c.l.b16 %v1443
    %v1515 = vunpack.c.l.b16 %v1444
    %v1516 = vunpack.c.l.b16 %v1445
    %v1517 = vunpack.c.l.b16 %v1446
    %v1518 = vunpack.c.l.b16 %v1447
    %v1519 = vunpack.c.l.b16 %v1448
    %v1520 = vunpack.c.l.b16 %v1449
    %v1521 = vunpack.c.l.b16 %v1450
    %v1522 = vunpack.c.l.b16 %v1451
    %v1523 = vunpack.c.l.b16 %v1452
    %v1524 = vunpack.c.l.b16 %v1453
    %v1525 = vunpack.c.l.b16 %v1454
    %v1526 = vunpack.c.l.b16 %v1455
    %v1527 = vunpack.c.l.b16 %v1456
    %v1528 = vunpack.c.l.b16 %v1457
    %v1529 = vunpack.c.l.b16 %v1458
    %v1530 = vunpack.c.l.b16 %v1459
    %v1531 = vunpack.c.l.b16 %v1460
    %v1532 = vpack.c.b16 %v1501, %v1500
    %v1533 = vpack.c.b16 %v1503, %v1502
    %v1534 = vpack.c.b16 %v1505, %v1504
    %v1535 = vpack.c.b16 %v1507, %v1506
    %v1536 = vpack.c.b16 %v1509, %v1508
    %v1537 = vpack.c.b16 %v1511, %v1510
    %v1538 = vpack.c.b16 %v1513, %v1512
    %v1539 = vpack.c.b16 %v1515, %v1514
    %v1540 = vpack.c.b16 %v1517, %v1516
    %v1541 = vpack.c.b16 %v1519, %v1518
    %v1542 = vpack.c.b16 %v1521, %v1520
    %v1543 = vpack.c.b16 %v1523, %v1522
    %v1544 = vpack.c.b16 %v1525, %v1524
    %v1545 = vpack.c.b16 %v1527, %v1526
    %v1546 = vpack.c.b16 %v1529, %v1528
    %v1547 = vpack.c.b16 %v1531, %v1530
    %1564 = vmatprep.subr.bf16.mxu0 0
    %1565 = vmatpush1.bf16.msra.mxu0 %v1532
    %1566 = vmatprep.subr.bf16.mxu0 0
    %1567 = vmatpush1.bf16.msra.mxu0 %v1533
    %1568 = vmatprep.subr.bf16.mxu0 0
    %1569 = vmatpush1.bf16.msra.mxu0 %v1534
    %1570 = vmatprep.subr.bf16.mxu0 0
    %1571 = vmatpush1.bf16.msra.mxu0 %v1535
    %1572 = vmatprep.subr.bf16.mxu0 0
    %1573 = vmatpush1.bf16.msra.mxu0 %v1536
    %1574 = vmatprep.subr.bf16.mxu0 0
    %1575 = vmatpush1.bf16.msra.mxu0 %v1537
    %1576 = vmatprep.subr.bf16.mxu0 0
    %1577 = vmatpush1.bf16.msra.mxu0 %v1538
    %1578 = vmatprep.subr.bf16.mxu0 0
    %1579 = vmatpush1.bf16.msra.mxu0 %v1539
    %1580 = vmatprep.subr.bf16.mxu0 0
    %1581 = vmatpush1.bf16.msra.mxu0 %v1540
    %1582 = vmatprep.subr.bf16.mxu0 0
    %1583 = vmatpush1.bf16.msra.mxu0 %v1541
    %1584 = vmatprep.subr.bf16.mxu0 0
    %1585 = vmatpush1.bf16.msra.mxu0 %v1542
    %1586 = vmatprep.subr.bf16.mxu0 0
    %1587 = vmatpush1.bf16.msra.mxu0 %v1543
    %1588 = vmatprep.subr.bf16.mxu0 0
    %1589 = vmatpush1.bf16.msra.mxu0 %v1544
    %1590 = vmatprep.subr.bf16.mxu0 0
    %1591 = vmatpush1.bf16.msra.mxu0 %v1545
    %1592 = vmatprep.subr.bf16.mxu0 0
    %1593 = vmatpush1.bf16.msra.mxu0 %v1546
    %1594 = vmatprep.subr.bf16.mxu0 0
    %1595 = vmatpush1.bf16.msra.mxu0 %v1547
    %1596 = vmatprep.mubr.bf16.mxu0 %v1428
    %1597 = vmatmul.mubr.bf16.gmra.mrb[0].mxu0 %v1427
    %v1598 = vpop.f32.mrb[0].mxu0
    %v1599 = vadd.f32 %v1466, %v1598
    %v1600 = vpop.f32.mrb[0].mxu0
    %v1601 = vpop.f32.mrb[0].mxu0
    %v1602 = vpop.f32.mrb[0].mxu0
    %1603 = vdwg.mxu0
    %v1604 = vmax.f32 %v1599, 0.0
    %v1605 = vpack.c.bf16 %v1604, %v1604
    %v1606 = vld [vmem:[%s7] sm:$0xf]
    %v1607 = vld [vmem:[%s7 + $0x4] sm:$0xf]
    %v1608 = vld [vmem:[%s7 + $0x8] sm:$0xf]
    %v1609 = vld [vmem:[%s7 + $0xc] sm:$0xf]
    %v1610 = vld [vmem:[%s7 + $0x10] sm:$0xf]
    %v1611 = vld [vmem:[%s7 + $0x14] sm:$0xf]
    %v1612 = vld [vmem:[%s7 + $0x18] sm:$0xf]
    %v1613 = vld [vmem:[%s7 + $0x1c] sm:$0xf]
    %v1614 = vld [vmem:[%s8] sm:$0x1]
    %v1616 = vlaneseq
    %v1617 = vshrl.u32 %v1616, 7
    %v1618 = vsub.s32 0, %v1617
    %v1619 = vrot.slane %v1614, %v1618
    %v1629 = vunpack.c.l.b16 %v1606
    %v1630 = vunpack.c.l.b16 %v1607
    %v1631 = vunpack.c.l.b16 %v1608
    %v1632 = vunpack.c.l.b16 %v1609
    %v1633 = vunpack.c.l.b16 %v1610
    %v1634 = vunpack.c.l.b16 %v1611
    %v1635 = vunpack.c.l.b16 %v1612
    %v1636 = vunpack.c.l.b16 %v1613
    %v1637 = vpack.c.b16 %v1630, %v1629
    %v1638 = vpack.c.b16 %v1632, %v1631
    %v1639 = vpack.c.b16 %v1634, %v1633
    %v1640 = vpack.c.b16 %v1636, %v1635
    %v1646 = vsel %vm297, %v1605, 0
    %1648 = vmatprep.subr.bf16.mxu0 0
    %1649 = vmatpush1.bf16.msra.mxu0 %v1637
    %1650 = vmatprep.subr.bf16.mxu0 0
    %1651 = vmatpush1.bf16.msra.mxu0 %v1638
    %1652 = vmatprep.subr.bf16.mxu0 0
    %1653 = vmatpush1.bf16.msra.mxu0 %v1639
    %1654 = vmatprep.subr.bf16.mxu0 0
    %1655 = vmatpush1.bf16.msra.mxu0 %v1640
    %1656 = vmatprep.subr.bf16.mxu0 0
    %1657 = vmatpush1.bf16.msra.mxu0 0
    %1658 = vmatprep.subr.bf16.mxu0 0
    %1659 = vmatpush1.bf16.msra.mxu0 0
    %1660 = vmatprep.subr.bf16.mxu0 0
    %1661 = vmatpush1.bf16.msra.mxu0 0
    %1662 = vmatprep.subr.bf16.mxu0 0
    %1663 = vmatpush1.bf16.msra.mxu0 0
    %1664 = vmatprep.subr.bf16.mxu0 0
    %1665 = vmatpush1.bf16.msra.mxu0 0
    %1666 = vmatprep.subr.bf16.mxu0 0
    %1667 = vmatpush1.bf16.msra.mxu0 0
    %1668 = vmatprep.subr.bf16.mxu0 0
    %1669 = vmatpush1.bf16.msra.mxu0 0
    %1670 = vmatprep.subr.bf16.mxu0 0
    %1671 = vmatpush1.bf16.msra.mxu0 0
    %1672 = vmatprep.subr.bf16.mxu0 0
    %1673 = vmatpush1.bf16.msra.mxu0 0
    %1674 = vmatprep.subr.bf16.mxu0 0
    %1675 = vmatpush1.bf16.msra.mxu0 0
    %1676 = vmatprep.subr.bf16.mxu0 0
    %1677 = vmatpush1.bf16.msra.mxu0 0
    %1678 = vmatprep.subr.bf16.mxu0 0
    %1679 = vmatpush1.bf16.msra.mxu0 0
    %1680 = vmatprep.mubr.bf16.mxu0 0
    %1681 = vmatmul.mubr.bf16.gmra.mrb[0].mxu0 %v1646
    %v1682 = vpop.f32.mrb[0].mxu0
    %v1683 = vadd.f32 %v1619, %v1682
    %v1684 = vpop.f32.mrb[0].mxu0
    %v1685 = vpop.f32.mrb[0].mxu0
    %v1686 = vpop.f32.mrb[0].mxu0
    %1687 = vdwg.mxu0
    %vm1688 = vcmask 15360
    %1689 = vst.msk [vmem:[%s9] sm:$0xff] %vm1688, %v1683
    // Predicated region
    $region46: #{tpu_custom_call.1} parent=1 // pred_check
      _
    $region47: #{tpu_custom_call.1} parent=1 // pred_check_branch
      %1691 = sbr.rel (0) target = $region49
    $region48: #{tpu_custom_call.1} parent=1 // pred_region
      _
    $region49: #{tpu_custom_call.1} parent=1 // pred_fallthru
      _
    // Predicated region
    $region50: #{tpu_custom_call.1} parent=1 // pred_check
      _
    $region51: #{tpu_custom_call.1} parent=1 // pred_check_branch
      %1693 = sbr.rel (0) target = $region53
    $region52: #{tpu_custom_call.1} parent=1 // pred_region
      _
    $region53: #{tpu_custom_call.1} parent=1 // pred_fallthru
      _
    %1694 = vsyncpa [#allocation3], 1
    %1695 = vsyncpa [#allocation5], 1

</llo_original>
